<compile_context>
chip_gen: v5e
topology: v5e:2x2
jax: 0.10.0
libtpu: 0.0.40
codegen_flags: <defaults>
</compile_context>

<pallas_src>
import functools

import jax
import jax.numpy as jnp
import numpy as np
from jax.experimental import pallas as pl
from jax.experimental.pallas import tpu as pltpu


# ----------------------------------------------------------------------------
# Helpers
# ----------------------------------------------------------------------------
def _round_up(x, m):
    return ((x + m - 1) // m) * m


def _pad_to(a, shape, dtype):
    a = jnp.asarray(a).astype(dtype)
    if a.shape == tuple(shape):
        return a
    idx = tuple(slice(0, s) for s in a.shape)
    return jnp.zeros(shape, dtype).at[idx].set(a)


# ----------------------------------------------------------------------------
# Tiled linear kernel:  y = x @ W^T + b   (f32 accumulator, bf16 MXU operands)
# ----------------------------------------------------------------------------
def linear_kernel(x_ref, wt_ref, b_ref, o_ref, acc_ref, *, k_axis):
    """One (tm, tn) output tile; contraction tiled along grid axis `k_axis`."""
    k = pl.program_id(k_axis)

    @pl.when(k == 0)
    def _():
        acc_ref[...] = jnp.zeros_like(acc_ref)

    acc_ref[...] += jnp.dot(
        x_ref[...], wt_ref[...], preferred_element_type=jnp.float32
    )

    @pl.when(k == pl.num_programs(k_axis) - 1)
    def _():
        o_ref[...] = (acc_ref[...] + b_ref[...]).astype(o_ref.dtype)


def linear(x2d, w, b, *, tm=512, tn=512, tk=512, out_dtype=jnp.bfloat16):
    """y = x @ W^T + b with W in PyTorch (out, in) convention."""
    M, e_in = x2d.shape
    e_out = w.shape[0]
    tm = min(tm, _round_up(M, 8))
    tn = min(tn, _round_up(e_out, 128))
    tk = min(tk, _round_up(e_in, 128))
    Mp, Kp, Np = _round_up(M, tm), _round_up(e_in, tk), _round_up(e_out, tn)

    xp = _pad_to(x2d, (Mp, Kp), jnp.bfloat16)
    wtp = _pad_to(w.T, (Kp, Np), jnp.bfloat16)
    bp = _pad_to(b.reshape(1, e_out), (1, Np), jnp.float32)

    out = pl.pallas_call(
        functools.partial(linear_kernel, k_axis=2),
        out_shape=jax.ShapeDtypeStruct((Mp, Np), out_dtype),
        grid=(Mp // tm, Np // tn, Kp // tk),
        in_specs=[
            pl.BlockSpec((tm, tk), lambda i, j, k: (i, k)),
            pl.BlockSpec((tk, tn), lambda i, j, k: (k, j)),
            pl.BlockSpec((1, tn), lambda i, j, k: (0, j)),
        ],
        out_specs=pl.BlockSpec((tm, tn), lambda i, j, k: (i, j)),
        scratch_shapes=[pltpu.VMEM((tm, tn), jnp.float32)],
        compiler_params=pltpu.CompilerParams(
            dimension_semantics=("parallel", "parallel", "arbitrary")
        ),
    )(xp, wtp, bp)
    return out[:M, :e_out]


def fused_qkv(x_stack, w_stack, b_stack, *, tm=512, tn=512, tk=512,
              out_dtype=jnp.bfloat16):
    """Three projections in one pallas_call: leading grid axis selects weight."""
    P, M, e_in = x_stack.shape
    e_out = w_stack.shape[1]
    tm = min(tm, _round_up(M, 8))
    tn = min(tn, _round_up(e_out, 128))
    tk = min(tk, _round_up(e_in, 128))
    Mp, Kp, Np = _round_up(M, tm), _round_up(e_in, tk), _round_up(e_out, tn)

    xp = _pad_to(x_stack, (P, Mp, Kp), jnp.bfloat16)
    wtp = _pad_to(jnp.swapaxes(w_stack, 1, 2), (P, Kp, Np), jnp.bfloat16)
    bp = _pad_to(b_stack.reshape(P, 1, e_out), (P, 1, Np), jnp.float32)

    out = pl.pallas_call(
        functools.partial(linear_kernel, k_axis=3),
        out_shape=jax.ShapeDtypeStruct((P, Mp, Np), out_dtype),
        grid=(P, Mp // tm, Np // tn, Kp // tk),
        in_specs=[
            pl.BlockSpec((None, tm, tk), lambda p, i, j, k: (p, i, k)),
            pl.BlockSpec((None, tk, tn), lambda p, i, j, k: (p, k, j)),
            pl.BlockSpec((None, 1, tn), lambda p, i, j, k: (p, 0, j)),
        ],
        out_specs=pl.BlockSpec((None, tm, tn), lambda p, i, j, k: (p, i, j)),
        scratch_shapes=[pltpu.VMEM((tm, tn), jnp.float32)],
        compiler_params=pltpu.CompilerParams(
            dimension_semantics=("parallel", "parallel", "parallel", "arbitrary")
        ),
    )(xp, wtp, bp)
    return out[:, :M, :e_out]


# ----------------------------------------------------------------------------
# Attention kernel: one (batch, head, q-tile) per grid step
# ----------------------------------------------------------------------------
def attn_kernel(*refs, scale, has_mask):
    """q_ref (tq,D) bf16, k_ref/v_ref (Lk,D) bf16, bias_ref (tq,Lk) bf16,
    ctx_ref (tq,D), attn_ref (tq,Lk)."""
    if has_mask:
        q_ref, k_ref, v_ref, bias_ref, ctx_ref, attn_ref = refs
    else:
        q_ref, k_ref, v_ref, ctx_ref, attn_ref = refs

    q = q_ref[...]
    k = k_ref[...]
    v = v_ref[...]

    # energy[q, k] = sum_d q[q, d] * k[k, d]  (bf16 MXU operands, f32 acc)
    s = jax.lax.dot_general(
        q, k, (((1,), (1,)), ((), ())), preferred_element_type=jnp.float32
    )
    s = s * jnp.float32(scale)
    if has_mask:
        # additive bias: 0 (keep) or -1e20 (mask).  -1e20 is effectively -inf
        # either pre- or post-scale; fully-masked rows come out uniform exactly
        # like the PyTorch reference.
        s = s + bias_ref[...].astype(jnp.float32)

    s_max = jnp.max(s, axis=-1, keepdims=True)
    e = jnp.exp(s - s_max)
    denom = jnp.sum(e, axis=-1, keepdims=True)          # >= 1, never zero
    p = e * (jnp.float32(1.0) / denom)                  # exact reciprocal

    attn_ref[...] = p.astype(attn_ref.dtype)
    ctx_ref[...] = jnp.dot(
        p.astype(jnp.bfloat16), v, preferred_element_type=jnp.float32
    ).astype(ctx_ref.dtype)


def attention(Q, K, V, mask, *, heads, scale, tq=256, attn_dtype=jnp.bfloat16):
    """Q: (N, Lq, E); K, V: (N, Lk, E); mask broadcastable to (N, 1, Lq, Lk)."""
    N, Lq, E = Q.shape
    Lk = K.shape[1]
    D = E // heads

    # Head split outside the kernel (single XLA transpose each way) so the
    # kernel works on dense (tq, D) / (Lk, D) tiles -- no lane-narrow slices.
    Qh = Q.reshape(N, Lq, heads, D).transpose(0, 2, 1, 3)
    Kh = K.reshape(N, Lk, heads, D).transpose(0, 2, 1, 3).astype(jnp.bfloat16)
    Vh = V.reshape(N, Lk, heads, D).transpose(0, 2, 1, 3).astype(jnp.bfloat16)

    tq = min(tq, _round_up(Lq, 8))
    Lqp = _round_up(Lq, tq)
    nq = Lqp // tq
    Qh = _pad_to(Qh, (N, heads, Lqp, D), jnp.bfloat16)

    in_specs = [
        pl.BlockSpec((None, None, tq, D), lambda n, h, qi: (n, h, qi, 0)),
        pl.BlockSpec((None, None, Lk, D), lambda n, h, qi: (n, h, 0, 0)),
        pl.BlockSpec((None, None, Lk, D), lambda n, h, qi: (n, h, 0, 0)),
    ]
    args = [Qh, Kh, Vh]

    has_mask = mask is not None
    if has_mask:
        m = jnp.asarray(mask)
        while m.ndim < 4:
            m = m[None]
        assert m.shape[1] == 1, "per-head masks not supported"  # TODO(synk)
        Nm = m.shape[0]
        assert Nm in (1, N), "mask batch dim must be 1 or N"
        # Precompute the additive bias once, head-free, as bf16 (small wire fmt).
        bias = jnp.where(m[:, 0] == 0, jnp.float32(-1e20), jnp.float32(0.0))
        bias = jnp.broadcast_to(bias, (Nm, Lq, Lk))
        bias = _pad_to(bias, (Nm, Lqp, Lk), jnp.bfloat16)
        if Nm == 1:
            mask_idx = lambda n, h, qi: (0, qi, 0)
        else:
            mask_idx = lambda n, h, qi: (n, qi, 0)
        in_specs.append(pl.BlockSpec((None, tq, Lk), mask_idx))
        args.append(bias)

    kernel = functools.partial(attn_kernel, scale=scale, has_mask=has_mask)

    ctx, attn = pl.pallas_call(
        kernel,
        out_shape=(
            jax.ShapeDtypeStruct((N, heads, Lqp, D), jnp.bfloat16),
            jax.ShapeDtypeStruct((N, heads, Lqp, Lk), attn_dtype),
        ),
        grid=(N, heads, nq),
        in_specs=in_specs,
        out_specs=(
            pl.BlockSpec((None, None, tq, D), lambda n, h, qi: (n, h, qi, 0)),
            pl.BlockSpec((None, None, tq, Lk), lambda n, h, qi: (n, h, qi, 0)),
        ),
        compiler_params=pltpu.CompilerParams(
            dimension_semantics=("parallel", "parallel", "parallel")
        ),
    )(*args)

    ctx = ctx[:, :, :Lq, :].transpose(0, 2, 1, 3).reshape(N, Lq, E)
    attn = attn[:, :, :Lq, :]
    return ctx, attn


# ----------------------------------------------------------------------------
# Forward (mirrors SelfAttention.forward)
# ----------------------------------------------------------------------------
def self_attention_forward(params, values, keys, query, mask, *, embed_size, heads):
    N, Lv, E = values.shape
    Lk = keys.shape[1]
    Lq = query.shape[1]
    assert Lv == Lk, "value_len must equal key_len"

    if Lv == Lk == Lq:
        # Fused Q/K/V projection: one pallas_call (weights stacked (3, E, E)).
        x_stack = jnp.stack([
            values.reshape(N * Lv, E),
            keys.reshape(N * Lk, E),
            query.reshape(N * Lq, E),
        ])
        w_stack = jnp.stack([params["wv"], params["wk"], params["wq"]])
        b_stack = jnp.stack([params["bv"], params["bk"], params["bq"]])
        proj = fused_qkv(x_stack, w_stack, b_stack)                 # bf16
        V = proj[0].reshape(N, Lv, E)
        K = proj[1].reshape(N, Lk, E)
        Q = proj[2].reshape(N, Lq, E)
    else:
        V = linear(values.reshape(N * Lv, E), params["wv"], params["bv"]).reshape(N, Lv, E)
        K = linear(keys.reshape(N * Lk, E), params["wk"], params["bk"]).reshape(N, Lk, E)
        Q = linear(query.reshape(N * Lq, E), params["wq"], params["bq"]).reshape(N, Lq, E)

    scale = 1.0 / float(np.sqrt(embed_size))
    ctx, attn = attention(Q, K, V, mask, heads=heads, scale=scale)

    # fc_out emits f32 so the module output dtype matches the PyTorch module.
    out = linear(ctx.reshape(N * Lq, E), params["wo"], params["bo"],
                 out_dtype=jnp.float32).reshape(N, Lq, E)
    return out, attn


# ----------------------------------------------------------------------------
# Pure-JAX f32 reference (mirrors the PyTorch code) for verification
# ----------------------------------------------------------------------------
def reference_forward(params, values, keys, query, mask, *, embed_size, heads):
    N, Lv, E = values.shape
    Lk = keys.shape[1]
    Lq = query.shape[1]
    D = E // heads
    V = values @ params["wv"].T + params["bv"]
    K = keys @ params["wk"].T + params["bk"]
    Q = query @ params["wq"].T + params["bq"]
    V = V.reshape(N, Lv, heads, D)
    K = K.reshape(N, Lk, heads, D)
    Q = Q.reshape(N, Lq, heads, D)
    energy = jnp.einsum("nqhd,nkhd->nhqk", Q, K)
    if mask is not None:
        energy = jnp.where(jnp.broadcast_to(mask, energy.shape) == 0, -1e20, energy)
    attn = jax.nn.softmax(energy / (embed_size ** 0.5), axis=3)
    out = jnp.einsum("nhql,nlhd->nqhd", attn, V).reshape(N, Lq, E)
    out = out @ params["wo"].T + params["bo"]
    return out, attn


# ----------------------------------------------------------------------------
# Main
# ----------------------------------------------------------------------------
if __name__ == "__main__":
    N, L, E, H = 2, 8, 32, 4  # batch, seq, embed_size, heads

    key = jax.random.PRNGKey(0)
    ks = jax.random.split(key, 12)

    # PyTorch nn.Linear(E, E) shapes: W (E, E), b (E,)
    params = {
        "wv": jax.random.normal(ks[0], (E, E), jnp.float32) * 0.1,
        "bv": jax.random.normal(ks[1], (E,), jnp.float32) * 0.1,
        "wk": jax.random.normal(ks[2], (E, E), jnp.float32) * 0.1,
        "bk": jax.random.normal(ks[3], (E,), jnp.float32) * 0.1,
        "wq": jax.random.normal(ks[4], (E, E), jnp.float32) * 0.1,
        "bq": jax.random.normal(ks[5], (E,), jnp.float32) * 0.1,
        "wo": jax.random.normal(ks[6], (E, E), jnp.float32) * 0.1,
        "bo": jax.random.normal(ks[7], (E,), jnp.float32) * 0.1,
    }

    values = jax.random.normal(ks[8], (N, L, E), jnp.float32)
    keys_in = jax.random.normal(ks[9], (N, L, E), jnp.float32)
    query = jax.random.normal(ks[10], (N, L, E), jnp.float32)

    # Causal mask (broadcastable to (N, H, Lq, Lk)), 1 = keep, 0 = mask out
    mask = jnp.tril(jnp.ones((L, L), jnp.float32)).reshape(1, 1, L, L)

    fwd = jax.jit(self_attention_forward, static_argnames=("embed_size", "heads"))
    out, attn = fwd(params, values, keys_in, query, mask, embed_size=E, heads=H)
    out = jax.block_until_ready(out)
    attn = jax.block_until_ready(attn)

    out_ref, attn_ref = reference_forward(
        params, values, keys_in, query, mask, embed_size=E, heads=H
    )

    # bf16 MXU operands / bf16 wire dtypes (f32 accumulation) -> compare
    # against the pure-f32 reference at bf16-appropriate tolerance.
    np.testing.assert_allclose(
        np.asarray(out, dtype=np.float32), np.asarray(out_ref), rtol=2e-2, atol=2e-2
    )
    np.testing.assert_allclose(
        np.asarray(attn.astype(jnp.float32)), np.asarray(attn_ref), rtol=2e-2, atol=2e-2
    )

    print("KERNEL_OK")
</pallas_src>

<mosaic_0001>
module attributes {stable_mosaic.version = 11 : i64} {
  func.func @linear_kernel(%arg0: i32, %arg1: i32, %arg2: i32, %arg3: i32, %arg4: memref<1x16x128xbf16, #tpu.memory_space<vmem>>, %arg5: memref<1x128x128xbf16, #tpu.memory_space<vmem>>, %arg6: memref<1x1x128xf32, #tpu.memory_space<vmem>>, %arg7: memref<1x16x128xbf16, #tpu.memory_space<vmem>>, %arg8: memref<16x128xf32, #tpu.memory_space<vmem>>) attributes {dimension_semantics = [#tpu.dimension_semantics<parallel>, #tpu.dimension_semantics<parallel>, #tpu.dimension_semantics<parallel>, #tpu.dimension_semantics<arbitrary>], iteration_bounds = array<i64: 3, 1, 1, 1>, scalar_prefetch = 0 : i64, scratch_operands = 1 : i64, tpu.core_type = #tpu.core_type<tc>, window_params = [{transform_indices = @transform_0, window_bounds = array<i64: 1, 16, 128>}, {transform_indices = @transform_1, window_bounds = array<i64: 1, 128, 128>}, {transform_indices = @transform_2, window_bounds = array<i64: 1, 1, 128>}, {transform_indices = @transform_3, window_bounds = array<i64: 1, 16, 128>}]} {
    %c0_i32 = arith.constant 0 : i32
    %0 = arith.cmpi eq, %arg3, %c0_i32 : i32
    %1 = arith.extui %0 : i1 to i32
    %c0_i32_0 = arith.constant 0 : i32
    %2 = arith.cmpi ne, %1, %c0_i32_0 : i32
    scf.if %2 {
      %cst_12 = arith.constant 0.000000e+00 : f32
      %14 = vector.broadcast %cst_12 : f32 to vector<16x128xf32>
      %c0_13 = arith.constant 0 : index
      %c0_14 = arith.constant 0 : index
      %15 = vector.load %arg8[%c0_13, %c0_14] : memref<16x128xf32, #tpu.memory_space<vmem>>, vector<16x128xf32>
      tpu.vector_store %arg8[%c0_13, %c0_14], %14 {strides = array<i32>} : memref<16x128xf32, #tpu.memory_space<vmem>>, vector<16x128xf32>,
    } else {
    }
    %c0 = arith.constant 0 : index
    %c0_1 = arith.constant 0 : index
    %3 = vector.load %arg8[%c0, %c0_1] : memref<16x128xf32, #tpu.memory_space<vmem>>, vector<16x128xf32>
    %c0_2 = arith.constant 0 : index
    %c0_3 = arith.constant 0 : index
    %c0_4 = arith.constant 0 : index
    %4 = vector.load %arg4[%c0_2, %c0_3, %c0_4] : memref<1x16x128xbf16, #tpu.memory_space<vmem>>, vector<1x16x128xbf16>
    %5 = vector.shape_cast %4 : vector<1x16x128xbf16> to vector<16x128xbf16>
    %c0_5 = arith.constant 0 : index
    %c0_6 = arith.constant 0 : index
    %c0_7 = arith.constant 0 : index
    %6 = vector.load %arg5[%c0_5, %c0_6, %c0_7] : memref<1x128x128xbf16, #tpu.memory_space<vmem>>, vector<1x128x128xbf16>
    %7 = vector.shape_cast %6 : vector<1x128x128xbf16> to vector<128x128xbf16>
    %cst = arith.constant dense<0.000000e+00> : vector<16x128xf32>
    %8 = tpu.matmul %5, %7, %cst {dimension_numbers = #tpu.dot_dimension_numbers<[1], [0], [0], [1], [0, 0, 1, 1], [], []>} : vector<16x128xbf16>, vector<128x128xbf16>, vector<16x128xf32> -> vector<16x128xf32>
    %9 = arith.addf %3, %8 : vector<16x128xf32>
    %c0_8 = arith.constant 0 : index
    %c0_9 = arith.constant 0 : index
    %10 = vector.load %arg8[%c0_8, %c0_9] : memref<16x128xf32, #tpu.memory_space<vmem>>, vector<16x128xf32>
    tpu.vector_store %arg8[%c0_8, %c0_9], %9 {strides = array<i32>} : memref<16x128xf32, #tpu.memory_space<vmem>>, vector<16x128xf32>,
    %c0_i32_10 = arith.constant 0 : i32
    %11 = arith.cmpi eq, %arg3, %c0_i32_10 : i32
    %12 = arith.extui %11 : i1 to i32
    %c0_i32_11 = arith.constant 0 : i32
    %13 = arith.cmpi ne, %12, %c0_i32_11 : i32
    scf.if %13 {
      %c0_12 = arith.constant 0 : index
      %c0_13 = arith.constant 0 : index
      %14 = vector.load %arg8[%c0_12, %c0_13] : memref<16x128xf32, #tpu.memory_space<vmem>>, vector<16x128xf32>
      %c0_14 = arith.constant 0 : index
      %c0_15 = arith.constant 0 : index
      %c0_16 = arith.constant 0 : index
      %15 = vector.load %arg6[%c0_14, %c0_15, %c0_16] : memref<1x1x128xf32, #tpu.memory_space<vmem>>, vector<1x1x128xf32>
      %16 = vector.shape_cast %15 : vector<1x1x128xf32> to vector<1x128xf32>
      %17 = vector.broadcast %16 : vector<1x128xf32> to vector<16x128xf32>
      %18 = arith.addf %14, %17 : vector<16x128xf32>
      %19 = arith.truncf %18 : vector<16x128xf32> to vector<16x128xbf16>
      %c0_17 = arith.constant 0 : index
      %c0_18 = arith.constant 0 : index
      %c0_19 = arith.constant 0 : index
      %20 = vector.load %arg7[%c0_17, %c0_18, %c0_19] : memref<1x16x128xbf16, #tpu.memory_space<vmem>>, vector<1x16x128xbf16>
      %21 = vector.shape_cast %20 : vector<1x16x128xbf16> to vector<16x128xbf16>
      %22 = vector.shape_cast %19 : vector<16x128xbf16> to vector<1x16x128xbf16>
      tpu.vector_store %arg7[%c0_17, %c0_18, %c0_19], %22 {strides = array<i32>} : memref<1x16x128xbf16, #tpu.memory_space<vmem>>, vector<1x16x128xbf16>,
    } else {
    }
    return
  }
  func.func @transform_0(%arg0: i32, %arg1: i32, %arg2: i32, %arg3: i32) -> (i32, i32, i32) {
    %c0_i32 = arith.constant 0 : i32
    return %arg0, %arg1, %arg3 : i32, i32, i32
  }
  func.func @transform_1(%arg0: i32, %arg1: i32, %arg2: i32, %arg3: i32) -> (i32, i32, i32) {
    %c0_i32 = arith.constant 0 : i32
    return %arg0, %arg3, %arg2 : i32, i32, i32
  }
  func.func @transform_2(%arg0: i32, %arg1: i32, %arg2: i32, %arg3: i32) -> (i32, i32, i32) {
    %c0_i32 = arith.constant 0 : i32
    %c0_i32_0 = arith.constant 0 : i32
    return %arg0, %c0_i32, %arg2 : i32, i32, i32
  }
  func.func @transform_3(%arg0: i32, %arg1: i32, %arg2: i32, %arg3: i32) -> (i32, i32, i32) {
    %c0_i32 = arith.constant 0 : i32
    return %arg0, %arg1, %arg2 : i32, i32, i32
  }
}

module attributes {stable_mosaic.version = 11 : i64} {
  func.func @attn_kernel(%arg0: i32, %arg1: i32, %arg2: i32, %arg3: memref<1x1x8x8xbf16, #tpu.memory_space<vmem>>, %arg4: memref<1x1x8x8xbf16, #tpu.memory_space<vmem>>, %arg5: memref<1x1x8x8xbf16, #tpu.memory_space<vmem>>, %arg6: memref<1x8x8xbf16, #tpu.memory_space<vmem>>, %arg7: memref<1x1x8x8xbf16, #tpu.memory_space<vmem>>, %arg8: memref<1x1x8x8xbf16, #tpu.memory_space<vmem>>) attributes {dimension_semantics = [#tpu.dimension_semantics<parallel>, #tpu.dimension_semantics<parallel>, #tpu.dimension_semantics<parallel>], iteration_bounds = array<i64: 2, 4, 1>, scalar_prefetch = 0 : i64, scratch_operands = 0 : i64, tpu.core_type = #tpu.core_type<tc>, window_params = [{transform_indices = @transform_0, window_bounds = array<i64: 1, 1, 8, 8>}, {transform_indices = @transform_1, window_bounds = array<i64: 1, 1, 8, 8>}, {transform_indices = @transform_2, window_bounds = array<i64: 1, 1, 8, 8>}, {transform_indices = @transform_3, window_bounds = array<i64: 1, 8, 8>}, {transform_indices = @transform_4, window_bounds = array<i64: 1, 1, 8, 8>}, {transform_indices = @transform_5, window_bounds = array<i64: 1, 1, 8, 8>}]} {
    %c0 = arith.constant 0 : index
    %c0_0 = arith.constant 0 : index
    %c0_1 = arith.constant 0 : index
    %c0_2 = arith.constant 0 : index
    %0 = vector.load %arg3[%c0, %c0_0, %c0_1, %c0_2] : memref<1x1x8x8xbf16, #tpu.memory_space<vmem>>, vector<1x1x8x8xbf16>
    %1 = vector.shape_cast %0 : vector<1x1x8x8xbf16> to vector<8x8xbf16>
    %c0_3 = arith.constant 0 : index
    %c0_4 = arith.constant 0 : index
    %c0_5 = arith.constant 0 : index
    %c0_6 = arith.constant 0 : index
    %2 = vector.load %arg4[%c0_3, %c0_4, %c0_5, %c0_6] : memref<1x1x8x8xbf16, #tpu.memory_space<vmem>>, vector<1x1x8x8xbf16>
    %3 = vector.shape_cast %2 : vector<1x1x8x8xbf16> to vector<8x8xbf16>
    %c0_7 = arith.constant 0 : index
    %c0_8 = arith.constant 0 : index
    %c0_9 = arith.constant 0 : index
    %c0_10 = arith.constant 0 : index
    %4 = vector.load %arg5[%c0_7, %c0_8, %c0_9, %c0_10] : memref<1x1x8x8xbf16, #tpu.memory_space<vmem>>, vector<1x1x8x8xbf16>
    %5 = vector.shape_cast %4 : vector<1x1x8x8xbf16> to vector<8x8xbf16>
    %cst = arith.constant dense<0.000000e+00> : vector<8x8xf32>
    %6 = tpu.matmul %1, %3, %cst {dimension_numbers = #tpu.dot_dimension_numbers<[1], [1], [0], [0], [0, 0, 1, 0], [], []>} : vector<8x8xbf16>, vector<8x8xbf16>, vector<8x8xf32> -> vector<8x8xf32>
    %cst_11 = arith.constant 0.176776692 : f32
    %7 = vector.broadcast %cst_11 : f32 to vector<8x8xf32>
    %8 = arith.mulf %6, %7 : vector<8x8xf32>
    %c0_12 = arith.constant 0 : index
    %c0_13 = arith.constant 0 : index
    %c0_14 = arith.constant 0 : index
    %9 = vector.load %arg6[%c0_12, %c0_13, %c0_14] : memref<1x8x8xbf16, #tpu.memory_space<vmem>>, vector<1x8x8xbf16>
    %10 = vector.shape_cast %9 : vector<1x8x8xbf16> to vector<8x8xbf16>
    %11 = arith.extf %10 : vector<8x8xbf16> to vector<8x8xf32>
    %12 = arith.addf %8, %11 : vector<8x8xf32>
    %cst_15 = arith.constant dense<0xFF800000> : vector<8xf32>
    %13 = vector.multi_reduction <maximumf>, %12, %cst_15 [1] : vector<8x8xf32> to vector<8xf32>
    %14 = vector.shape_cast %13 : vector<8xf32> to vector<8x1xf32>
    %15 = vector.broadcast %14 : vector<8x1xf32> to vector<8x8xf32>
    %16 = arith.subf %12, %15 : vector<8x8xf32>
    %17 = math.exp %16 : vector<8x8xf32>
    %cst_16 = arith.constant dense<0.000000e+00> : vector<8xf32>
    %18 = vector.multi_reduction <add>, %17, %cst_16 [1] : vector<8x8xf32> to vector<8xf32>
    %19 = vector.shape_cast %18 : vector<8xf32> to vector<8x1xf32>
    %cst_17 = arith.constant 1.000000e+00 : f32
    %20 = vector.broadcast %cst_17 : f32 to vector<8x1xf32>
    %21 = arith.divf %20, %19 : vector<8x1xf32>
    %22 = vector.broadcast %21 : vector<8x1xf32> to vector<8x8xf32>
    %23 = arith.mulf %17, %22 : vector<8x8xf32>
    %24 = arith.truncf %23 : vector<8x8xf32> to vector<8x8xbf16>
    %c0_18 = arith.constant 0 : index
    %c0_19 = arith.constant 0 : index
    %c0_20 = arith.constant 0 : index
    %c0_21 = arith.constant 0 : index
    %25 = vector.load %arg8[%c0_18, %c0_19, %c0_20, %c0_21] : memref<1x1x8x8xbf16, #tpu.memory_space<vmem>>, vector<1x1x8x8xbf16>
    %26 = vector.shape_cast %25 : vector<1x1x8x8xbf16> to vector<8x8xbf16>
    %27 = vector.shape_cast %24 : vector<8x8xbf16> to vector<1x1x8x8xbf16>
    tpu.vector_store %arg8[%c0_18, %c0_19, %c0_20, %c0_21], %27 {strides = array<i32>} : memref<1x1x8x8xbf16, #tpu.memory_space<vmem>>, vector<1x1x8x8xbf16>,
    %28 = arith.truncf %23 : vector<8x8xf32> to vector<8x8xbf16>
    %cst_22 = arith.constant dense<0.000000e+00> : vector<8x8xf32>
    %29 = tpu.matmul %28, %5, %cst_22 {dimension_numbers = #tpu.dot_dimension_numbers<[1], [0], [0], [1], [0, 0, 1, 1], [], []>} : vector<8x8xbf16>, vector<8x8xbf16>, vector<8x8xf32> -> vector<8x8xf32>
    %30 = arith.truncf %29 : vector<8x8xf32> to vector<8x8xbf16>
    %c0_23 = arith.constant 0 : index
    %c0_24 = arith.constant 0 : index
    %c0_25 = arith.constant 0 : index
    %c0_26 = arith.constant 0 : index
    %31 = vector.load %arg7[%c0_23, %c0_24, %c0_25, %c0_26] : memref<1x1x8x8xbf16, #tpu.memory_space<vmem>>, vector<1x1x8x8xbf16>
    %32 = vector.shape_cast %31 : vector<1x1x8x8xbf16> to vector<8x8xbf16>
    %33 = vector.shape_cast %30 : vector<8x8xbf16> to vector<1x1x8x8xbf16>
    tpu.vector_store %arg7[%c0_23, %c0_24, %c0_25, %c0_26], %33 {strides = array<i32>} : memref<1x1x8x8xbf16, #tpu.memory_space<vmem>>, vector<1x1x8x8xbf16>,
    return
  }
  func.func @transform_0(%arg0: i32, %arg1: i32, %arg2: i32) -> (i32, i32, i32, i32) {
    %c0_i32 = arith.constant 0 : i32
    %c0_i32_0 = arith.constant 0 : i32
    return %arg0, %arg1, %arg2, %c0_i32 : i32, i32, i32, i32
  }
  func.func @transform_1(%arg0: i32, %arg1: i32, %arg2: i32) -> (i32, i32, i32, i32) {
    %c0_i32 = arith.constant 0 : i32
    %c0_i32_0 = arith.constant 0 : i32
    %c0_i32_1 = arith.constant 0 : i32
    return %arg0, %arg1, %c0_i32, %c0_i32_0 : i32, i32, i32, i32
  }
  func.func @transform_2(%arg0: i32, %arg1: i32, %arg2: i32) -> (i32, i32, i32, i32) {
    %c0_i32 = arith.constant 0 : i32
    %c0_i32_0 = arith.constant 0 : i32
    %c0_i32_1 = arith.constant 0 : i32
    return %arg0, %arg1, %c0_i32, %c0_i32_0 : i32, i32, i32, i32
  }
  func.func @transform_3(%arg0: i32, %arg1: i32, %arg2: i32) -> (i32, i32, i32) {
    %c0_i32 = arith.constant 0 : i32
    %c0_i32_0 = arith.constant 0 : i32
    %c0_i32_1 = arith.constant 0 : i32
    return %c0_i32, %arg2, %c0_i32_0 : i32, i32, i32
  }
  func.func @transform_4(%arg0: i32, %arg1: i32, %arg2: i32) -> (i32, i32, i32, i32) {
    %c0_i32 = arith.constant 0 : i32
    %c0_i32_0 = arith.constant 0 : i32
    return %arg0, %arg1, %arg2, %c0_i32 : i32, i32, i32, i32
  }
  func.func @transform_5(%arg0: i32, %arg1: i32, %arg2: i32) -> (i32, i32, i32, i32) {
    %c0_i32 = arith.constant 0 : i32
    %c0_i32_0 = arith.constant 0 : i32
    return %arg0, %arg1, %arg2, %c0_i32 : i32, i32, i32, i32
  }
}

module attributes {stable_mosaic.version = 11 : i64} {
  func.func @linear_kernel(%arg0: i32, %arg1: i32, %arg2: i32, %arg3: memref<16x128xbf16, #tpu.memory_space<vmem>>, %arg4: memref<128x128xbf16, #tpu.memory_space<vmem>>, %arg5: memref<1x128xf32, #tpu.memory_space<vmem>>, %arg6: memref<16x128xf32, #tpu.memory_space<vmem>>, %arg7: memref<16x128xf32, #tpu.memory_space<vmem>>) attributes {dimension_semantics = [#tpu.dimension_semantics<parallel>, #tpu.dimension_semantics<parallel>, #tpu.dimension_semantics<arbitrary>], iteration_bounds = array<i64: 1, 1, 1>, scalar_prefetch = 0 : i64, scratch_operands = 1 : i64, tpu.core_type = #tpu.core_type<tc>, window_params = [{transform_indices = @transform_0, window_bounds = array<i64: 16, 128>}, {transform_indices = @transform_1, window_bounds = array<i64: 128, 128>}, {transform_indices = @transform_2, window_bounds = array<i64: 1, 128>}, {transform_indices = @transform_3, window_bounds = array<i64: 16, 128>}]} {
    %c0_i32 = arith.constant 0 : i32
    %0 = arith.cmpi eq, %arg2, %c0_i32 : i32
    %1 = arith.extui %0 : i1 to i32
    %c0_i32_0 = arith.constant 0 : i32
    %2 = arith.cmpi ne, %1, %c0_i32_0 : i32
    scf.if %2 {
      %cst_10 = arith.constant 0.000000e+00 : f32
      %12 = vector.broadcast %cst_10 : f32 to vector<16x128xf32>
      %c0_11 = arith.constant 0 : index
      %c0_12 = arith.constant 0 : index
      %13 = vector.load %arg7[%c0_11, %c0_12] : memref<16x128xf32, #tpu.memory_space<vmem>>, vector<16x128xf32>
      tpu.vector_store %arg7[%c0_11, %c0_12], %12 {strides = array<i32>} : memref<16x128xf32, #tpu.memory_space<vmem>>, vector<16x128xf32>,
    } else {
    }
    %c0 = arith.constant 0 : index
    %c0_1 = arith.constant 0 : index
    %3 = vector.load %arg7[%c0, %c0_1] : memref<16x128xf32, #tpu.memory_space<vmem>>, vector<16x128xf32>
    %c0_2 = arith.constant 0 : index
    %c0_3 = arith.constant 0 : index
    %4 = vector.load %arg3[%c0_2, %c0_3] : memref<16x128xbf16, #tpu.memory_space<vmem>>, vector<16x128xbf16>
    %c0_4 = arith.constant 0 : index
    %c0_5 = arith.constant 0 : index
    %5 = vector.load %arg4[%c0_4, %c0_5] : memref<128x128xbf16, #tpu.memory_space<vmem>>, vector<128x128xbf16>
    %cst = arith.constant dense<0.000000e+00> : vector<16x128xf32>
    %6 = tpu.matmul %4, %5, %cst {dimension_numbers = #tpu.dot_dimension_numbers<[1], [0], [0], [1], [0, 0, 1, 1], [], []>} : vector<16x128xbf16>, vector<128x128xbf16>, vector<16x128xf32> -> vector<16x128xf32>
    %7 = arith.addf %3, %6 : vector<16x128xf32>
    %c0_6 = arith.constant 0 : index
    %c0_7 = arith.constant 0 : index
    %8 = vector.load %arg7[%c0_6, %c0_7] : memref<16x128xf32, #tpu.memory_space<vmem>>, vector<16x128xf32>
    tpu.vector_store %arg7[%c0_6, %c0_7], %7 {strides = array<i32>} : memref<16x128xf32, #tpu.memory_space<vmem>>, vector<16x128xf32>,
    %c0_i32_8 = arith.constant 0 : i32
    %9 = arith.cmpi eq, %arg2, %c0_i32_8 : i32
    %10 = arith.extui %9 : i1 to i32
    %c0_i32_9 = arith.constant 0 : i32
    %11 = arith.cmpi ne, %10, %c0_i32_9 : i32
    scf.if %11 {
      %c0_10 = arith.constant 0 : index
      %c0_11 = arith.constant 0 : index
      %12 = vector.load %arg7[%c0_10, %c0_11] : memref<16x128xf32, #tpu.memory_space<vmem>>, vector<16x128xf32>
      %c0_12 = arith.constant 0 : index
      %c0_13 = arith.constant 0 : index
      %13 = vector.load %arg5[%c0_12, %c0_13] : memref<1x128xf32, #tpu.memory_space<vmem>>, vector<1x128xf32>
      %14 = vector.broadcast %13 : vector<1x128xf32> to vector<16x128xf32>
      %15 = arith.addf %12, %14 : vector<16x128xf32>
      %c0_14 = arith.constant 0 : index
      %c0_15 = arith.constant 0 : index
      %16 = vector.load %arg6[%c0_14, %c0_15] : memref<16x128xf32, #tpu.memory_space<vmem>>, vector<16x128xf32>
      tpu.vector_store %arg6[%c0_14, %c0_15], %15 {strides = array<i32>} : memref<16x128xf32, #tpu.memory_space<vmem>>, vector<16x128xf32>,
    } else {
    }
    return
  }
  func.func @transform_0(%arg0: i32, %arg1: i32, %arg2: i32) -> (i32, i32) {
    %c0_i32 = arith.constant 0 : i32
    return %arg0, %arg2 : i32, i32
  }
  func.func @transform_1(%arg0: i32, %arg1: i32, %arg2: i32) -> (i32, i32) {
    %c0_i32 = arith.constant 0 : i32
    return %arg2, %arg1 : i32, i32
  }
  func.func @transform_2(%arg0: i32, %arg1: i32, %arg2: i32) -> (i32, i32) {
    %c0_i32 = arith.constant 0 : i32
    %c0_i32_0 = arith.constant 0 : i32
    return %c0_i32, %arg1 : i32, i32
  }
  func.func @transform_3(%arg0: i32, %arg1: i32, %arg2: i32) -> (i32, i32) {
    %c0_i32 = arith.constant 0 : i32
    return %arg0, %arg1 : i32, i32
  }
}

</mosaic_0001>

<llo_original>
// kernel: squeeze.6
$region0: #{squeeze.6}
  %s0 = inlined_call_operand.vmem [shape: bf16[1,16,32], index: 0, kind: input, shape index: {}]
  %s1 = inlined_call_operand.vmem [shape: bf16[2,8,4,8], index: 1, kind: output, shape index: {}]
  $region1: #{squeeze.6} parent=0
    #allocation0 [shape = 'u8[65536]{0}', space=vmem, size = 0x10000, scoped, tag = 'scoped mem for output reshape']
    #allocation1 [shape = 'u8[8192]{0}', space=vmem, size = 0x2000, scoped, tag = 'scoped mem for input reshape']
    %s3 = ssub.s32 256, 1
    %s4 = scalar_lea.vmem %s0, 4
    %s5 = sshrl.u32 %s3, 1
    %s6 = sor.u32 %s3, %s5
    %s7 = sand.u32 %s6, 85
    %s8 = sshrl.u32 %s7, 1
    %s9 = sor.u32 %s7, %s8
    %s10 = sand.u32 51, %s9
    %s11 = sshrl.u32 %s10, 2
    %s12 = sor.u32 %s10, %s11
    %s13 = sand.u32 15, %s12
    %v14 = vld [vmem:[%s4] sm:%s13]
    %v15 = vunpack.c.l.bf16 %v14
    %v16 = vunpack.c.h.bf16 %v14
    %s17 = scalar_lea.vmem [#allocation1], 8
    %18 = vst [vmem:[%s17] sm:%s3] %v15
    %s19 = sshrl.u32 %s3, 1
    %s20 = sor.u32 %s3, %s19
    %s21 = sand.u32 %s20, 85
    %s22 = sshrl.u32 %s21, 1
    %s23 = sor.u32 %s21, %s22
    %s24 = sand.u32 51, %s23
    %s25 = sshrl.u32 %s24, 2
    %s26 = sor.u32 %s24, %s25
    %s27 = sand.u32 15, %s26
    %v28 = vld [vmem:[%s0] sm:%s27]
    %v29 = vunpack.c.l.bf16 %v28
    %v30 = vunpack.c.h.bf16 %v28
    %31 = vst [vmem:[#allocation1] sm:%s3] %v29
    %v32 = vld [vmem:[#allocation1] sm:$0xff]
    %vm33 = vcmask 64512
    %34 = vst.msk [vmem:[#allocation0] ss:$8 sm:$0xf] %vm33, %v32
    %35 = vst.msk [vmem:[#allocation0] ss:$8 sm:$0xf0] %vm33, %v32
    %s36 = scalar_lea.vmem [#allocation1], 8
    %v37 = vld [vmem:[%s36] sm:$0xff]
    %vm38 = vcmask 64512
    %s39 = scalar_lea.vmem [#allocation0], 64
    %40 = vst.msk [vmem:[%s39] ss:$8 sm:$0xf] %vm38, %v37
    %s41 = scalar_lea.vmem [#allocation0], 64
    %42 = vst.msk [vmem:[%s41] ss:$8 sm:$0xf0] %vm38, %v37
    %v43 = vld [vmem:[#allocation1] sm:$0xff]
    %44 = vrot.lane.b32.xlu0 %v43, 120
    %v45 = vpop.permute.xlu0 %44
    %vm46 = vcmask 64512
    %s47 = scalar_lea.vmem [#allocation0], 1
    %48 = vst.msk [vmem:[%s47] ss:$8 sm:$0xf] %vm46, %v45
    %s49 = scalar_lea.vmem [#allocation0], 1
    %50 = vst.msk [vmem:[%s49] ss:$8 sm:$0xf0] %vm46, %v45
    %s51 = scalar_lea.vmem [#allocation1], 8
    %v52 = vld [vmem:[%s51] sm:$0xff]
    %53 = vrot.lane.b32.xlu0 %v52, 120
    %v54 = vpop.permute.xlu0 %53
    %vm55 = vcmask 64512
    %s56 = scalar_lea.vmem [#allocation0], 65
    %57 = vst.msk [vmem:[%s56] ss:$8 sm:$0xf] %vm55, %v54
    %s58 = scalar_lea.vmem [#allocation0], 65
    %59 = vst.msk [vmem:[%s58] ss:$8 sm:$0xf0] %vm55, %v54
    %v60 = vld [vmem:[#allocation1] sm:$0xff]
    %61 = vrot.lane.b32.xlu0 %v60, 112
    %v62 = vpop.permute.xlu0 %61
    %vm63 = vcmask 64512
    %s64 = scalar_lea.vmem [#allocation0], 2
    %65 = vst.msk [vmem:[%s64] ss:$8 sm:$0xf] %vm63, %v62
    %s66 = scalar_lea.vmem [#allocation0], 2
    %67 = vst.msk [vmem:[%s66] ss:$8 sm:$0xf0] %vm63, %v62
    %s68 = scalar_lea.vmem [#allocation1], 8
    %v69 = vld [vmem:[%s68] sm:$0xff]
    %70 = vrot.lane.b32.xlu0 %v69, 112
    %v71 = vpop.permute.xlu0 %70
    %vm72 = vcmask 64512
    %s73 = scalar_lea.vmem [#allocation0], 66
    %74 = vst.msk [vmem:[%s73] ss:$8 sm:$0xf] %vm72, %v71
    %s75 = scalar_lea.vmem [#allocation0], 66
    %76 = vst.msk [vmem:[%s75] ss:$8 sm:$0xf0] %vm72, %v71
    %v77 = vld [vmem:[#allocation1] sm:$0xff]
    %78 = vrot.lane.b32.xlu0 %v77, 104
    %v79 = vpop.permute.xlu0 %78
    %vm80 = vcmask 64512
    %s81 = scalar_lea.vmem [#allocation0], 3
    %82 = vst.msk [vmem:[%s81] ss:$8 sm:$0xf] %vm80, %v79
    %s83 = scalar_lea.vmem [#allocation0], 3
    %84 = vst.msk [vmem:[%s83] ss:$8 sm:$0xf0] %vm80, %v79
    %s85 = scalar_lea.vmem [#allocation1], 8
    %v86 = vld [vmem:[%s85] sm:$0xff]
    %87 = vrot.lane.b32.xlu0 %v86, 104
    %v88 = vpop.permute.xlu0 %87
    %vm89 = vcmask 64512
    %s90 = scalar_lea.vmem [#allocation0], 67
    %91 = vst.msk [vmem:[%s90] ss:$8 sm:$0xf] %vm89, %v88
    %s92 = scalar_lea.vmem [#allocation0], 67
    %93 = vst.msk [vmem:[%s92] ss:$8 sm:$0xf0] %vm89, %v88
    %s95 = ssub.s32 16, 1
    %v96 = vld [vmem:[#allocation0] sm:%s95]
    %v97 = vpack.c.bf16 0.0, %v96
    %s99 = ssub.s32 4, 1
    %100 = vst [vmem:[%s1] sm:%s99] %v97
    %s101 = scalar_lea.vmem [#allocation0], 8
    %v102 = vld [vmem:[%s101] sm:%s95]
    %v103 = vpack.c.bf16 0.0, %v102
    %s105 = ssub.s32 4, 1
    %s106 = scalar_lea.vmem %s1, 2
    %107 = vst [vmem:[%s106] sm:%s105] %v103
    %s108 = scalar_lea.vmem [#allocation0], 16
    %v109 = vld [vmem:[%s108] sm:%s95]
    %v110 = vpack.c.bf16 0.0, %v109
    %s112 = ssub.s32 4, 1
    %s113 = scalar_lea.vmem %s1, 4
    %114 = vst [vmem:[%s113] sm:%s112] %v110
    %s115 = scalar_lea.vmem [#allocation0], 24
    %v116 = vld [vmem:[%s115] sm:%s95]
    %v117 = vpack.c.bf16 0.0, %v116
    %s119 = ssub.s32 4, 1
    %s120 = scalar_lea.vmem %s1, 6
    %121 = vst [vmem:[%s120] sm:%s119] %v117
    %s122 = scalar_lea.vmem [#allocation0], 32
    %v123 = vld [vmem:[%s122] sm:%s95]
    %v124 = vpack.c.bf16 0.0, %v123
    %s126 = ssub.s32 4, 1
    %s127 = scalar_lea.vmem %s1, 8
    %128 = vst [vmem:[%s127] sm:%s126] %v124
    %s129 = scalar_lea.vmem [#allocation0], 40
    %v130 = vld [vmem:[%s129] sm:%s95]
    %v131 = vpack.c.bf16 0.0, %v130
    %s133 = ssub.s32 4, 1
    %s134 = scalar_lea.vmem %s1, 10
    %135 = vst [vmem:[%s134] sm:%s133] %v131
    %s136 = scalar_lea.vmem [#allocation0], 48
    %v137 = vld [vmem:[%s136] sm:%s95]
    %v138 = vpack.c.bf16 0.0, %v137
    %s140 = ssub.s32 4, 1
    %s141 = scalar_lea.vmem %s1, 12
    %142 = vst [vmem:[%s141] sm:%s140] %v138
    %s143 = scalar_lea.vmem [#allocation0], 56
    %v144 = vld [vmem:[%s143] sm:%s95]
    %v145 = vpack.c.bf16 0.0, %v144
    %s147 = ssub.s32 4, 1
    %s148 = scalar_lea.vmem %s1, 14
    %149 = vst [vmem:[%s148] sm:%s147] %v145
    %s150 = scalar_lea.vmem [#allocation0], 64
    %v151 = vld [vmem:[%s150] sm:%s95]
    %v152 = vpack.c.bf16 0.0, %v151
    %s154 = ssub.s32 4, 1
    %s155 = scalar_lea.vmem %s1, 16
    %156 = vst [vmem:[%s155] sm:%s154] %v152
    %s157 = scalar_lea.vmem [#allocation0], 72
    %v158 = vld [vmem:[%s157] sm:%s95]
    %v159 = vpack.c.bf16 0.0, %v158
    %s161 = ssub.s32 4, 1
    %s162 = scalar_lea.vmem %s1, 18
    %163 = vst [vmem:[%s162] sm:%s161] %v159
    %s164 = scalar_lea.vmem [#allocation0], 80
    %v165 = vld [vmem:[%s164] sm:%s95]
    %v166 = vpack.c.bf16 0.0, %v165
    %s168 = ssub.s32 4, 1
    %s169 = scalar_lea.vmem %s1, 20
    %170 = vst [vmem:[%s169] sm:%s168] %v166
    %s171 = scalar_lea.vmem [#allocation0], 88
    %v172 = vld [vmem:[%s171] sm:%s95]
    %v173 = vpack.c.bf16 0.0, %v172
    %s175 = ssub.s32 4, 1
    %s176 = scalar_lea.vmem %s1, 22
    %177 = vst [vmem:[%s176] sm:%s175] %v173
    %s178 = scalar_lea.vmem [#allocation0], 96
    %v179 = vld [vmem:[%s178] sm:%s95]
    %v180 = vpack.c.bf16 0.0, %v179
    %s182 = ssub.s32 4, 1
    %s183 = scalar_lea.vmem %s1, 24
    %184 = vst [vmem:[%s183] sm:%s182] %v180
    %s185 = scalar_lea.vmem [#allocation0], 104
    %v186 = vld [vmem:[%s185] sm:%s95]
    %v187 = vpack.c.bf16 0.0, %v186
    %s189 = ssub.s32 4, 1
    %s190 = scalar_lea.vmem %s1, 26
    %191 = vst [vmem:[%s190] sm:%s189] %v187
    %s192 = scalar_lea.vmem [#allocation0], 112
    %v193 = vld [vmem:[%s192] sm:%s95]
    %v194 = vpack.c.bf16 0.0, %v193
    %s196 = ssub.s32 4, 1
    %s197 = scalar_lea.vmem %s1, 28
    %198 = vst [vmem:[%s197] sm:%s196] %v194
    %s199 = scalar_lea.vmem [#allocation0], 120
    %v200 = vld [vmem:[%s199] sm:%s95]
    %v201 = vpack.c.bf16 0.0, %v200
    %s203 = ssub.s32 4, 1
    %s204 = scalar_lea.vmem %s1, 30
    %205 = vst [vmem:[%s204] sm:%s203] %v201

// kernel: self_attention_forward.4
$region0: #{self_attention_forward.4}
  #allocation0 [shape = 'u32[]', space=smem, size = 0x4, offset = 0x4, fixed_abs, tag = 'smem constant byte address 0x4 - core index']
  #allocation1 [shape = 'u32[72,128]{1,0:T(1,128)}', space=vmem, size = 0x9000, scoped, tag = 'internal scratch']
  %s0 = inlined_call_operand.vmem [shape: bf16[2,4,8,8], index: 0, kind: input, shape index: {}]
  %s1 = inlined_call_operand.vmem [shape: bf16[2,4,8,8], index: 1, kind: input, shape index: {}]
  %s2 = inlined_call_operand.vmem [shape: bf16[2,4,8,8], index: 2, kind: input, shape index: {}]
  %s3 = inlined_call_operand.vmem [shape: bf16[1,8,8], index: 3, kind: input, shape index: {}]
  %s4 = inlined_call_operand.vmem [shape: bf16[2,4,8,8], index: 4, kind: output, shape index: {0}]
  %s5 = inlined_call_operand.hbm [shape: bf16[2,4,8,8], index: 5, kind: output, shape index: {1}]
  %6 = xla_tuple %s4, %s5
  %s7 = sld [smem:[#allocation0]]
  $region57: #{self_attention_forward.4} parent=0
    _
  %s9 = ssub.s32 1, %s7
  %s10 = scalar_select 0, %s9, %s7
  $region1: #{self_attention_forward.4} parent=0
    #allocation2 [shape = 'u8[4096]{0}', space=vmem, size = 0x1000, scoped, tag = 'output window, operand 1']
    #allocation3 [shape = 's32[2]{0}', space=sflag, size = 0x8, scoped, tag = 'scoped memory for self_attention_forward.4']
    %11 = vsyncpa [#allocation3], 0
    %s12 = scalar_lea.sflag [#allocation3], 1
    %13 = vsyncpa %s12, 0
    loop: start=0, step=1, limit=10
    $region2: #{self_attention_forward.4} parent=1 // loop_pre_header
      _
    $region3: #{self_attention_forward.4} parent=1 // loop_header
      %s15 = sphi 0, %s19
      %p16 = scmp.ge.s32.totalorder %s15, 10
      %s22 = sphi 0, %s41
      %s23 = sphi 0, %s37
      %s24 = sphi 0, %s33
      %s25 = sphi 0, %s22
      %s26 = sphi 0, %s23
      %s27 = sphi 0, %s24
      %s28 = sphi 0, %s25
      %s29 = sphi 0, %s26
      %s30 = sphi 0, %s27
      %s48 = sphi 0, %s50
      %s51 = sphi 0, %s48
      %s52 = sphi 0, %s51
      %s68 = sphi 0, %s52
      %s76 = sphi 0, %s78
      %s79 = sphi 0, %s76
      %s80 = sphi 0, %s79
      %s96 = sphi 0, %s80
      %s104 = sphi 0, %s106
      %s107 = sphi 0, %s104
      %s108 = sphi 0, %s107
      %s124 = sphi 0, %s108
      %s130 = sphi 0, %s132
      %s133 = sphi 0, %s130
      %s134 = sphi 0, %s133
      %s150 = sphi 0, %s134
      %s160 = sphi 0, %s162
      %s163 = sphi 0, %s160
      %s164 = sphi 0, %s163
      %s180 = sphi 0, %s164
      %s190 = sphi 0, %s192
      %s193 = sphi 0, %s190
      %s194 = sphi 0, %s193
      %s210 = sphi 0, %s194
    $region4: #{self_attention_forward.4} parent=1 // loop_header_branch
      %18 = sbr.rel (%p16) target = $region8
    $region5: #{self_attention_forward.4} parent=1 // loop_body
      %s20 = ssub.s32 %s15, 1
      %s21 = ssub.s32 %s15, 2
      %s31 = sadd.s32 1, %s24
      %p32 = scmp.ge.s32.totalorder %s31, 1
      %s33 = scalar_select %p32, 0, %s31
      %s34 = sadd.s32 1, %s23
      %s35 = scalar_select %p32, %s34, %s23
      %p36 = scmp.ge.s32.totalorder %s35, 4
      %s37 = scalar_select %p36, 0, %s35
      %s38 = sadd.s32 1, %s22
      %s39 = scalar_select %p36, %s38, %s22
      %p40 = scmp.ge.s32.totalorder %s39, 2
      %s41 = scalar_select %p40, 0, %s39
      %s42 = ssub.s32 %s22, %s41
      %s43 = ssub.s32 %s23, %s37
      %s44 = sor.u32 %s42, %s43
      %s45 = ssub.s32 %s24, %s33
      %s46 = sor.u32 %s44, %s45
      %p47 = scmp.eq.s32.totalorder %s46, 0
      %s49 = sadd.s32 %s48, 1
      %s50 = scalar_select %p47, %s48, %s49
      %p53 = pneg %p47
      %p54 = scmp.eq.s32.totalorder %s15, 7
      %p55 = por %p53, %p54
      %p56 = scmp.ne.s32.totalorder %s48, %s51
      %p57 = scmp.eq.s32.totalorder %s15, 0
      %p58 = por %p56, %p57
      %p59 = scmp.ne.s32.totalorder %s48, %s51
      %p60 = scmp.eq.s32.totalorder %s20, 7
      %p61 = por %p59, %p60
      %p62 = scmp.ne.s32.totalorder %s51, %s52
      %p63 = scmp.eq.s32.totalorder %s20, 0
      %p64 = por %p62, %p63
      %p65 = scmp.ne.s32.totalorder %s51, %s52
      %p66 = scmp.eq.s32.totalorder %s21, 7
      %p67 = por %p65, %p66
      %p69 = scmp.ne.s32.totalorder %s52, %s68
      %p70 = scmp.eq.s32.totalorder %s21, 0
      %p71 = por %p69, %p70
      %s72 = ssub.s32 %s22, %s41
      %s73 = ssub.s32 %s23, %s37
      %s74 = sor.u32 %s72, %s73
      %p75 = scmp.eq.s32.totalorder %s74, 0
      %s77 = sadd.s32 %s76, 1
      %s78 = scalar_select %p75, %s76, %s77
      %p81 = pneg %p75
      %p82 = scmp.eq.s32.totalorder %s15, 7
      %p83 = por %p81, %p82
      %p84 = scmp.ne.s32.totalorder %s76, %s79
      %p85 = scmp.eq.s32.totalorder %s15, 0
      %p86 = por %p84, %p85
      %p87 = scmp.ne.s32.totalorder %s76, %s79
      %p88 = scmp.eq.s32.totalorder %s20, 7
      %p89 = por %p87, %p88
      %p90 = scmp.ne.s32.totalorder %s79, %s80
      %p91 = scmp.eq.s32.totalorder %s20, 0
      %p92 = por %p90, %p91
      %p93 = scmp.ne.s32.totalorder %s79, %s80
      %p94 = scmp.eq.s32.totalorder %s21, 7
      %p95 = por %p93, %p94
      %p97 = scmp.ne.s32.totalorder %s80, %s96
      %p98 = scmp.eq.s32.totalorder %s21, 0
      %p99 = por %p97, %p98
      %s100 = ssub.s32 %s22, %s41
      %s101 = ssub.s32 %s23, %s37
      %s102 = sor.u32 %s100, %s101
      %p103 = scmp.eq.s32.totalorder %s102, 0
      %s105 = sadd.s32 %s104, 1
      %s106 = scalar_select %p103, %s104, %s105
      %p109 = pneg %p103
      %p110 = scmp.eq.s32.totalorder %s15, 7
      %p111 = por %p109, %p110
      %p112 = scmp.ne.s32.totalorder %s104, %s107
      %p113 = scmp.eq.s32.totalorder %s15, 0
      %p114 = por %p112, %p113
      %p115 = scmp.ne.s32.totalorder %s104, %s107
      %p116 = scmp.eq.s32.totalorder %s20, 7
      %p117 = por %p115, %p116
      %p118 = scmp.ne.s32.totalorder %s107, %s108
      %p119 = scmp.eq.s32.totalorder %s20, 0
      %p120 = por %p118, %p119
      %p121 = scmp.ne.s32.totalorder %s107, %s108
      %p122 = scmp.eq.s32.totalorder %s21, 7
      %p123 = por %p121, %p122
      %p125 = scmp.ne.s32.totalorder %s108, %s124
      %p126 = scmp.eq.s32.totalorder %s21, 0
      %p127 = por %p125, %p126
      %s128 = ssub.s32 %s24, %s33
      %p129 = scmp.eq.s32.totalorder %s128, 0
      %s131 = sadd.s32 %s130, 1
      %s132 = scalar_select %p129, %s130, %s131
      %p135 = pneg %p129
      %p136 = scmp.eq.s32.totalorder %s15, 7
      %p137 = por %p135, %p136
      %p138 = scmp.ne.s32.totalorder %s130, %s133
      %p139 = scmp.eq.s32.totalorder %s15, 0
      %p140 = por %p138, %p139
      %p141 = scmp.ne.s32.totalorder %s130, %s133
      %p142 = scmp.eq.s32.totalorder %s20, 7
      %p143 = por %p141, %p142
      %p144 = scmp.ne.s32.totalorder %s133, %s134
      %p145 = scmp.eq.s32.totalorder %s20, 0
      %p146 = por %p144, %p145
      %p147 = scmp.ne.s32.totalorder %s133, %s134
      %p148 = scmp.eq.s32.totalorder %s21, 7
      %p149 = por %p147, %p148
      %p151 = scmp.ne.s32.totalorder %s134, %s150
      %p152 = scmp.eq.s32.totalorder %s21, 0
      %p153 = por %p151, %p152
      %s154 = ssub.s32 %s22, %s41
      %s155 = ssub.s32 %s23, %s37
      %s156 = sor.u32 %s154, %s155
      %s157 = ssub.s32 %s24, %s33
      %s158 = sor.u32 %s156, %s157
      %p159 = scmp.eq.s32.totalorder %s158, 0
      %s161 = sadd.s32 %s160, 1
      %s162 = scalar_select %p159, %s160, %s161
      %p165 = pneg %p159
      %p166 = scmp.eq.s32.totalorder %s15, 7
      %p167 = por %p165, %p166
      %p168 = scmp.ne.s32.totalorder %s160, %s163
      %p169 = scmp.eq.s32.totalorder %s15, 0
      %p170 = por %p168, %p169
      %p171 = scmp.ne.s32.totalorder %s160, %s163
      %p172 = scmp.eq.s32.totalorder %s20, 7
      %p173 = por %p171, %p172
      %p174 = scmp.ne.s32.totalorder %s163, %s164
      %p175 = scmp.eq.s32.totalorder %s20, 0
      %p176 = por %p174, %p175
      %p177 = scmp.ne.s32.totalorder %s163, %s164
      %p178 = scmp.eq.s32.totalorder %s21, 7
      %p179 = por %p177, %p178
      %p181 = scmp.ne.s32.totalorder %s164, %s180
      %p182 = scmp.eq.s32.totalorder %s21, 0
      %p183 = por %p181, %p182
      %s184 = ssub.s32 %s22, %s41
      %s185 = ssub.s32 %s23, %s37
      %s186 = sor.u32 %s184, %s185
      %s187 = ssub.s32 %s24, %s33
      %s188 = sor.u32 %s186, %s187
      %p189 = scmp.eq.s32.totalorder %s188, 0
      %s191 = sadd.s32 %s190, 1
      %s192 = scalar_select %p189, %s190, %s191
      %p195 = pneg %p189
      %p196 = scmp.eq.s32.totalorder %s15, 7
      %p197 = por %p195, %p196
      %p198 = scmp.ne.s32.totalorder %s190, %s193
      %p199 = scmp.eq.s32.totalorder %s15, 0
      %p200 = por %p198, %p199
      %p201 = scmp.ne.s32.totalorder %s190, %s193
      %p202 = scmp.eq.s32.totalorder %s20, 7
      %p203 = por %p201, %p202
      %p204 = scmp.ne.s32.totalorder %s193, %s194
      %p205 = scmp.eq.s32.totalorder %s20, 0
      %p206 = por %p204, %p205
      %p207 = scmp.ne.s32.totalorder %s193, %s194
      %p208 = scmp.eq.s32.totalorder %s21, 7
      %p209 = por %p207, %p208
      %p211 = scmp.ne.s32.totalorder %s194, %s210
      %p212 = scmp.eq.s32.totalorder %s21, 0
      %p213 = por %p211, %p212
      %p214 = scmp.le.s32.totalorder 1, %s15
      %p215 = scmp.lt.s32.totalorder %s15, 9
      %p216 = pnand %p214, %p215
      %p217 = pneg %p216
      // Predicated region
      $region9: #{self_attention_forward.4} parent=5 // pred_check
        _
      $region10: #{self_attention_forward.4} parent=5 // pred_check_branch
        %219 = sbr.rel (%p216) target = $region12
      $region11: #{self_attention_forward.4} parent=5 // pred_region
        %s220 = ssub.s32 %s15, 1
        // Predicated region
        $region13: #{self_attention_forward.4} parent=11 // pred_check
          %p221 = pneg %p146
        $region14: #{self_attention_forward.4} parent=11 // pred_check_branch
          %223 = sbr.rel (%p221) target = $region16
        $region15: #{self_attention_forward.4} parent=11 // pred_region
          %p224 = scmp.lt.s32.totalorder %s27, 0
          %s225 = scalar_select %p224, %s27, 0
          %s226 = smul.addr %s225, 4
          %s227 = scalar_lea.vmem %s3, %s226
        $region16: #{self_attention_forward.4} parent=11 // pred_fallthru
          _
      $region12: #{self_attention_forward.4} parent=5 // pred_fallthru
        _
      %p228 = scmp.lt.s32.totalorder %s15, 8
      // Predicated region
      $region17: #{self_attention_forward.4} parent=5 // pred_check
        %p229 = pneg %p228
      $region18: #{self_attention_forward.4} parent=5 // pred_check_branch
        %231 = sbr.rel (%p229) target = $region20
      $region19: #{self_attention_forward.4} parent=5 // pred_region
        // Predicated region
        $region21: #{self_attention_forward.4} parent=19 // pred_check
          %p232 = pneg %p58
        $region22: #{self_attention_forward.4} parent=19 // pred_check_branch
          %234 = sbr.rel (%p232) target = $region24
        $region23: #{self_attention_forward.4} parent=19 // pred_region
          %p235 = scmp.lt.s32.totalorder %s22, 1
          %s236 = scalar_select %p235, %s22, 1
          %p237 = scmp.lt.s32.totalorder %s23, 3
          %s238 = scalar_select %p237, %s23, 3
          %p239 = scmp.lt.s32.totalorder %s24, 0
          %s240 = scalar_select %p239, %s24, 0
          %s241 = sadd.s32 %s240, %s238
          %s242 = smul.addr %s236, 4
          %s243 = sadd.s32 %s241, %s242
          %s244 = smul.addr %s243, 4
          %s245 = scalar_lea.vmem %s0, %s244
        $region24: #{self_attention_forward.4} parent=19 // pred_fallthru
          _
        // Predicated region
        $region25: #{self_attention_forward.4} parent=19 // pred_check
          %p246 = pneg %p86
        $region26: #{self_attention_forward.4} parent=19 // pred_check_branch
          %248 = sbr.rel (%p246) target = $region28
        $region27: #{self_attention_forward.4} parent=19 // pred_region
          %p249 = scmp.lt.s32.totalorder %s22, 1
          %s250 = scalar_select %p249, %s22, 1
          %p251 = scmp.lt.s32.totalorder %s23, 3
          %s252 = scalar_select %p251, %s23, 3
          %s253 = smul.addr %s250, 4
          %s254 = sadd.s32 %s252, %s253
          %s255 = smul.addr %s254, 4
          %s256 = scalar_lea.vmem %s1, %s255
        $region28: #{self_attention_forward.4} parent=19 // pred_fallthru
          _
        // Predicated region
        $region29: #{self_attention_forward.4} parent=19 // pred_check
          %p257 = pneg %p114
        $region30: #{self_attention_forward.4} parent=19 // pred_check_branch
          %259 = sbr.rel (%p257) target = $region32
        $region31: #{self_attention_forward.4} parent=19 // pred_region
          %p260 = scmp.lt.s32.totalorder %s22, 1
          %s261 = scalar_select %p260, %s22, 1
          %p262 = scmp.lt.s32.totalorder %s23, 3
          %s263 = scalar_select %p262, %s23, 3
          %s264 = smul.addr %s261, 4
          %s265 = sadd.s32 %s263, %s264
          %s266 = smul.addr %s265, 4
          %s267 = scalar_lea.vmem %s2, %s266
        $region32: #{self_attention_forward.4} parent=19 // pred_fallthru
          _
      $region20: #{self_attention_forward.4} parent=5 // pred_fallthru
        _
      %p268 = scmp.le.s32.totalorder 1, %s15
      %p269 = scmp.lt.s32.totalorder %s15, 9
      %p270 = pnand %p268, %p269
      %p271 = pneg %p270
      // Predicated region
      $region33: #{self_attention_forward.4} parent=5 // pred_check
        _
      $region34: #{self_attention_forward.4} parent=5 // pred_check_branch
        %273 = sbr.rel (%p270) target = $region36
      $region35: #{self_attention_forward.4} parent=5 // pred_region
        %s274 = ssub.s32 %s15, 1
        %p275 = scmp.lt.s32.totalorder %s25, 1
        %s276 = scalar_select %p275, %s25, 1
        %p277 = scmp.lt.s32.totalorder %s26, 3
        %s278 = scalar_select %p277, %s26, 3
        %p279 = scmp.lt.s32.totalorder %s27, 0
        %s280 = scalar_select %p279, %s27, 0
        %s281 = sadd.s32 %s280, %s278
        %s282 = smul.addr %s276, 4
        %s283 = sadd.s32 %s281, %s282
        %s284 = smul.addr %s283, 4
        %s285 = scalar_lea.vmem %s0, %s284
        %p286 = pneg %p64
        %p287 = pneg %p61
        %p288 = scmp.lt.s32.totalorder %s25, 1
        %s289 = scalar_select %p288, %s25, 1
        %p290 = scmp.lt.s32.totalorder %s26, 3
        %s291 = scalar_select %p290, %s26, 3
        %s292 = smul.addr %s289, 4
        %s293 = sadd.s32 %s291, %s292
        %s294 = smul.addr %s293, 4
        %s295 = scalar_lea.vmem %s1, %s294
        %p296 = pneg %p92
        %p297 = pneg %p89
        %p298 = scmp.lt.s32.totalorder %s25, 1
        %s299 = scalar_select %p298, %s25, 1
        %p300 = scmp.lt.s32.totalorder %s26, 3
        %s301 = scalar_select %p300, %s26, 3
        %s302 = smul.addr %s299, 4
        %s303 = sadd.s32 %s301, %s302
        %s304 = smul.addr %s303, 4
        %s305 = scalar_lea.vmem %s2, %s304
        %p306 = pneg %p120
        %p307 = pneg %p117
        %p308 = scmp.lt.s32.totalorder %s27, 0
        %s309 = scalar_select %p308, %s27, 0
        %s310 = smul.addr %s309, 4
        %s311 = scalar_lea.vmem %s3, %s310
        %p312 = pneg %p146
        %p313 = pneg %p143
        %p314 = pneg %p176
        %p315 = pneg %p173
        %p316 = scmp.lt.s32.totalorder %s25, 1
        %s317 = scalar_select %p316, %s25, 1
        %p318 = scmp.lt.s32.totalorder %s26, 3
        %s319 = scalar_select %p318, %s26, 3
        %p320 = scmp.lt.s32.totalorder %s27, 0
        %s321 = scalar_select %p320, %s27, 0
        %s322 = sadd.s32 %s321, %s319
        %s323 = smul.addr %s317, 4
        %s324 = sadd.s32 %s322, %s323
        %s325 = smul.addr %s324, 4
        %s326 = scalar_lea.vmem %s4, %s325
        %p327 = pneg %p206
        %p328 = pneg %p203
        %s329 = sand.u32 %s193, 1
        %s330 = scalar_lea.sflag [#allocation3], %s329
        %s331 = sand.u32 %s193, 1
        %s332 = smul.addr %s331, 4
        %s333 = scalar_lea.vmem [#allocation2], %s332
        %p334 = scmp.lt.s32.totalorder %s25, 1
        %s335 = scalar_select %p334, %s25, 1
        %p336 = scmp.lt.s32.totalorder %s26, 3
        %s337 = scalar_select %p336, %s26, 3
        %p338 = scmp.lt.s32.totalorder %s27, 0
        %s339 = scalar_select %p338, %s27, 0
        %s340 = sadd.s32 %s339, %s337
        %s341 = smul.addr %s335, 4
        %s342 = sadd.s32 %s340, %s341
        %s343 = smul.addr %s342, 4
        %s344 = scalar_lea.vmem %s0, %s343
        %p345 = scmp.lt.s32.totalorder %s25, 1
        %s346 = scalar_select %p345, %s25, 1
        %p347 = scmp.lt.s32.totalorder %s26, 3
        %s348 = scalar_select %p347, %s26, 3
        %s349 = smul.addr %s346, 4
        %s350 = sadd.s32 %s348, %s349
        %s351 = smul.addr %s350, 4
        %s352 = scalar_lea.vmem %s1, %s351
        %p353 = scmp.lt.s32.totalorder %s25, 1
        %s354 = scalar_select %p353, %s25, 1
        %p355 = scmp.lt.s32.totalorder %s26, 3
        %s356 = scalar_select %p355, %s26, 3
        %s357 = smul.addr %s354, 4
        %s358 = sadd.s32 %s356, %s357
        %s359 = smul.addr %s358, 4
        %s360 = scalar_lea.vmem %s2, %s359
        %p361 = scmp.lt.s32.totalorder %s27, 0
        %s362 = scalar_select %p361, %s27, 0
        %s363 = smul.addr %s362, 4
        %s364 = scalar_lea.vmem %s3, %s363
        %p365 = scmp.lt.s32.totalorder %s25, 1
        %s366 = scalar_select %p365, %s25, 1
        %p367 = scmp.lt.s32.totalorder %s26, 3
        %s368 = scalar_select %p367, %s26, 3
        %p369 = scmp.lt.s32.totalorder %s27, 0
        %s370 = scalar_select %p369, %s27, 0
        %s371 = sadd.s32 %s370, %s368
        %s372 = smul.addr %s366, 4
        %s373 = sadd.s32 %s371, %s372
        %s374 = smul.addr %s373, 4
        %s375 = scalar_lea.vmem %s4, %s374
        %v377 = vld [vmem:[%s344] sm:$0xf]
        %v378 = vld [vmem:[%s352] sm:$0xf]
        %v379 = vld [vmem:[%s360] sm:$0xf]
        %vm380 = vcmask 64512
        %v382 = vsel %vm380, %v377, 0
        %v385 = vsel %vm380, %v378, 0
        %387 = vmatpush.bf16.xpose.msra.mxu0 0
        %388 = vmatpush.bf16.xpose.msra.mxu0 0
        %389 = vmatpush.bf16.xpose.msra.mxu0 0
        %390 = vmatpush.bf16.xpose.msra.mxu0 0
        %391 = vmatpush.bf16.xpose.msra.mxu0 0
        %392 = vmatpush.bf16.xpose.msra.mxu0 0
        %393 = vmatpush.bf16.xpose.msra.mxu0 0
        %394 = vmatpush.bf16.xpose.msra.mxu0 %v385
        %395 = vmatmul.bf16.gmra.mxu0 %v382
        %v396 = vpop.f32.mrf.mxu0
        %v397 = vadd.f32 0.0, %v396
        %v398 = vpop.f32.mrf.mxu0
        %399 = vdwg.mxu0
        %v400 = vmul.f32 %v397, 0.17677669
        %v401 = vld [vmem:[%s364] sm:$0xf]
        %v402 = vunpack.c.l.bf16 %v401
        %v403 = vadd.f32 %v400, %v402
        %v404 = vsel %vm380, %v403, -inf
        %405 = vmax.xlane.f32.xlu0 %v404
        %v406 = vpop.xlane.xlu0 %405
        %v407 = vsub.f32 %v403, %v406
        %v408 = vmul.f32 %v407, 1.442695
        %v409 = vpow.pop %v408
        %v410 = vsel %vm380, %v409, 0.0
        %411 = vadd.xlane.f32.xlu0 %v410
        %v412 = vpop.xlane.xlu0 %411
        %v413 = vrcp.pop %v412
        %v414 = vmul.f32 %v412, %v413
        %v415 = vsub.f32 1.0, %v414
        %v416 = vmul.f32 %v413, %v415
        %v417 = vadd.f32 %v413, %v416
        %vm418 = vweird.f32 %v412
        %vm419 = vweird.f32 %v413
        %vm420 = vmor %vm418, %vm419
        %v421 = vsel %vm420, %v413, %v417
        %v422 = vand.u32 2147483647, %v412
        %vm423 = vcmp.eq.f32.partialorder %v422, 8.507059e+37
        %v424 = vand.u32 %v412, 2147483648
        %v425 = vor.u32 1.1754944e-38, %v424
        %v426 = vsel %vm423, %v425, %v421
        %v427 = vmul.f32 1.0, %v426
        %v428 = vmul.f32 %v409, %v427
        %v429 = vpack.c.bf16 %v428, %v428
        %vm430 = vcmask 60416
        %431 = vst.msk [vmem:[%s333] sm:$0xf] %vm430, %v429
        %v433 = vsel %vm380, %v429, 0
        %vm435 = vcmask 1043456
        %v437 = vsel %vm435, %v379, 0
        %439 = vmatpush.bf16.msra.mxu0 0
        %440 = vmatpush.bf16.msra.mxu0 0
        %441 = vmatpush.bf16.msra.mxu0 0
        %442 = vmatpush.bf16.msra.mxu0 0
        %443 = vmatpush.bf16.msra.mxu0 0
        %444 = vmatpush.bf16.msra.mxu0 0
        %445 = vmatpush.bf16.msra.mxu0 0
        %446 = vmatpush.bf16.msra.mxu0 %v437
        %447 = vmatmul.bf16.gmra.mxu0 %v433
        %v448 = vpop.f32.mrf.mxu0
        %v449 = vadd.f32 0.0, %v448
        %v450 = vpop.f32.mrf.mxu0
        %451 = vdwg.mxu0
        %v452 = vpack.c.bf16 %v449, %v449
        %453 = vst.msk [vmem:[%s375] sm:$0xf] %vm430, %v452
        %p454 = scmp.lt.s32.totalorder %s25, 1
        %s455 = scalar_select %p454, %s25, 1
        %p456 = scmp.lt.s32.totalorder %s26, 3
        %s457 = scalar_select %p456, %s26, 3
        %p458 = scmp.lt.s32.totalorder %s27, 0
        %s459 = scalar_select %p458, %s27, 0
        %s460 = sadd.s32 %s459, %s457
        %s461 = smul.addr %s455, 4
        %s462 = sadd.s32 %s460, %s461
        %s463 = smul.addr %s462, 4
        %s464 = scalar_lea.vmem %s4, %s463
        %s465 = sand.u32 %s193, 1
        %s466 = scalar_lea.sflag [#allocation3], %s465
        %s467 = sand.u32 %s193, 1
        %s468 = smul.addr %s467, 4
        %s469 = scalar_lea.vmem [#allocation2], %s468
        // Predicated region
        $region37: #{self_attention_forward.4} parent=35 // pred_check
          %p470 = pneg %p173
        $region38: #{self_attention_forward.4} parent=35 // pred_check_branch
          %472 = sbr.rel (%p470) target = $region40
        $region39: #{self_attention_forward.4} parent=35 // pred_region
          _
        $region40: #{self_attention_forward.4} parent=35 // pred_fallthru
          _
        // Predicated region
        $region41: #{self_attention_forward.4} parent=35 // pred_check
          %p473 = pneg %p203
        $region42: #{self_attention_forward.4} parent=35 // pred_check_branch
          %475 = sbr.rel (%p473) target = $region44
        $region43: #{self_attention_forward.4} parent=35 // pred_region
          %477 = vsyncadd %s466, 0
          %s478 = sadd.s32 %s27, %s26
          %s479 = smul.addr %s25, 4
          %s480 = sadd.s32 %s478, %s479
          %s481 = smul.addr %s480, 4
          %s482 = scalar_lea.hbm %s5, %s481
          %s484 = sshll.u32 %s469, 4
          %s485 = int_to_ptr.vmem [resolvable:$true] %s484
          %s486 = sshll.u32 %s482, 4
          %s487 = int_to_ptr.hbm [resolvable:$true] %s486
          %489 = dma.vmem_to_hbm [thread:$0]  %s485, 64, %s487, %s466
        $region44: #{self_attention_forward.4} parent=35 // pred_fallthru
          _
      $region36: #{self_attention_forward.4} parent=5 // pred_fallthru
        _
      %p490 = scmp.le.s32.totalorder 2, %s15
      // Predicated region
      $region45: #{self_attention_forward.4} parent=5 // pred_check
        %p491 = pneg %p490
      $region46: #{self_attention_forward.4} parent=5 // pred_check_branch
        %493 = sbr.rel (%p491) target = $region48
      $region47: #{self_attention_forward.4} parent=5 // pred_region
        %s494 = ssub.s32 %s15, 2
        // Predicated region
        $region49: #{self_attention_forward.4} parent=47 // pred_check
          %p495 = pneg %p179
        $region50: #{self_attention_forward.4} parent=47 // pred_check_branch
          %497 = sbr.rel (%p495) target = $region52
        $region51: #{self_attention_forward.4} parent=47 // pred_region
          %p498 = scmp.lt.s32.totalorder %s28, 1
          %s499 = scalar_select %p498, %s28, 1
          %p500 = scmp.lt.s32.totalorder %s29, 3
          %s501 = scalar_select %p500, %s29, 3
          %p502 = scmp.lt.s32.totalorder %s30, 0
          %s503 = scalar_select %p502, %s30, 0
          %s504 = sadd.s32 %s503, %s501
          %s505 = smul.addr %s499, 4
          %s506 = sadd.s32 %s504, %s505
          %s507 = smul.addr %s506, 4
          %s508 = scalar_lea.vmem %s4, %s507
        $region52: #{self_attention_forward.4} parent=47 // pred_fallthru
          _
        // Predicated region
        $region53: #{self_attention_forward.4} parent=47 // pred_check
          %p509 = pneg %p209
        $region54: #{self_attention_forward.4} parent=47 // pred_check_branch
          %511 = sbr.rel (%p509) target = $region56
        $region55: #{self_attention_forward.4} parent=47 // pred_region
          %s512 = sand.u32 %s194, 1
          %s513 = scalar_lea.sflag [#allocation3], %s512
          %s514 = sand.u32 %s194, 1
          %s515 = smul.addr %s514, 4
          %s516 = scalar_lea.vmem [#allocation2], %s515
          %518 = dma.done %s513, 64
        $region56: #{self_attention_forward.4} parent=47 // pred_fallthru
          _
      $region48: #{self_attention_forward.4} parent=5 // pred_fallthru
        _
    $region6: #{self_attention_forward.4} parent=1 // loop_footer
      %s19 = sadd.s32 1, %s15
    $region7: #{self_attention_forward.4} parent=1 // loop_footer_branch
      %14 = sbr.rel target = $region3
    $region8: #{self_attention_forward.4} parent=1 // loop_exit
      _
    %519 = vsyncpa [#allocation3], 1
    %s520 = scalar_lea.sflag [#allocation3], 1
    %521 = vsyncpa %s520, 1

// kernel: self_attention_forward.3
$region0: #{self_attention_forward.3}
  #allocation0 [shape = 'u32[]', space=smem, size = 0x4, offset = 0x4, fixed_abs, tag = 'smem constant byte address 0x4 - core index']
  #allocation1 [shape = 'u32[72,128]{1,0:T(1,128)}', space=vmem, size = 0x9000, scoped, tag = 'internal scratch']
  #allocation2 [shape = 'f32[16,128]{1,0:T(8,128)}', space=vmem, size = 0x2000, scoped, tag = 'scratch operand']
  %s0 = inlined_call_operand.vmem [shape: bf16[3,16,128], index: 0, kind: input, shape index: {}]
  %s1 = inlined_call_operand.vmem [shape: bf16[3,128,128], index: 1, kind: input, shape index: {}]
  %s2 = inlined_call_operand.vmem [shape: f32[3,1,128], index: 2, kind: input, shape index: {}]
  %s3 = inlined_call_operand.vmem [shape: bf16[3,16,128], index: 3, kind: output, shape index: {}]
  %s4 = sld [smem:[#allocation0]]
  $region53: #{self_attention_forward.3} parent=0
    _
  %s6 = ssub.s32 1, %s4
  %s7 = scalar_select 0, %s6, %s4
  loop: start=0, step=1, limit=5
  $region2: #{self_attention_forward.3} parent=0 // loop_pre_header
    _
  $region3: #{self_attention_forward.3} parent=0 // loop_header
    %s9 = sphi 0, %s13
    %p10 = scmp.ge.s32.totalorder %s9, 5
    %s16 = sphi 0, %s42
    %s17 = sphi 0, %s38
    %s18 = sphi 0, %s34
    %s19 = sphi 0, %s30
    %s20 = sphi 0, %s16
    %s21 = sphi 0, %s17
    %s22 = sphi 0, %s18
    %s23 = sphi 0, %s19
    %s24 = sphi 0, %s20
    %s25 = sphi 0, %s21
    %s26 = sphi 0, %s22
    %s27 = sphi 0, %s23
    %s49 = sphi 0, %s51
    %s52 = sphi 0, %s49
    %s53 = sphi 0, %s52
    %s69 = sphi 0, %s53
    %s79 = sphi 0, %s81
    %s82 = sphi 0, %s79
    %s83 = sphi 0, %s82
    %s99 = sphi 0, %s83
    %s107 = sphi 0, %s109
    %s110 = sphi 0, %s107
    %s111 = sphi 0, %s110
    %s127 = sphi 0, %s111
    %s137 = sphi 0, %s139
    %s140 = sphi 0, %s137
    %s141 = sphi 0, %s140
    %s157 = sphi 0, %s141
  $region4: #{self_attention_forward.3} parent=0 // loop_header_branch
    %12 = sbr.rel (%p10) target = $region8
  $region5: #{self_attention_forward.3} parent=0 // loop_body
    %s14 = ssub.s32 %s9, 1
    %s15 = ssub.s32 %s9, 2
    %s28 = sadd.s32 1, %s19
    %p29 = scmp.ge.s32.totalorder %s28, 1
    %s30 = scalar_select %p29, 0, %s28
    %s31 = sadd.s32 1, %s18
    %s32 = scalar_select %p29, %s31, %s18
    %p33 = scmp.ge.s32.totalorder %s32, 1
    %s34 = scalar_select %p33, 0, %s32
    %s35 = sadd.s32 1, %s17
    %s36 = scalar_select %p33, %s35, %s17
    %p37 = scmp.ge.s32.totalorder %s36, 1
    %s38 = scalar_select %p37, 0, %s36
    %s39 = sadd.s32 1, %s16
    %s40 = scalar_select %p37, %s39, %s16
    %p41 = scmp.ge.s32.totalorder %s40, 3
    %s42 = scalar_select %p41, 0, %s40
    %s43 = ssub.s32 %s16, %s42
    %s44 = ssub.s32 %s17, %s38
    %s45 = sor.u32 %s43, %s44
    %s46 = ssub.s32 %s19, %s30
    %s47 = sor.u32 %s45, %s46
    %p48 = scmp.eq.s32.totalorder %s47, 0
    %s50 = sadd.s32 %s49, 1
    %s51 = scalar_select %p48, %s49, %s50
    %p54 = pneg %p48
    %p55 = scmp.eq.s32.totalorder %s9, 2
    %p56 = por %p54, %p55
    %p57 = scmp.ne.s32.totalorder %s49, %s52
    %p58 = scmp.eq.s32.totalorder %s9, 0
    %p59 = por %p57, %p58
    %p60 = scmp.ne.s32.totalorder %s49, %s52
    %p61 = scmp.eq.s32.totalorder %s14, 2
    %p62 = por %p60, %p61
    %p63 = scmp.ne.s32.totalorder %s52, %s53
    %p64 = scmp.eq.s32.totalorder %s14, 0
    %p65 = por %p63, %p64
    %p66 = scmp.ne.s32.totalorder %s52, %s53
    %p67 = scmp.eq.s32.totalorder %s15, 2
    %p68 = por %p66, %p67
    %p70 = scmp.ne.s32.totalorder %s53, %s69
    %p71 = scmp.eq.s32.totalorder %s15, 0
    %p72 = por %p70, %p71
    %s73 = ssub.s32 %s16, %s42
    %s74 = ssub.s32 %s19, %s30
    %s75 = sor.u32 %s73, %s74
    %s76 = ssub.s32 %s18, %s34
    %s77 = sor.u32 %s75, %s76
    %p78 = scmp.eq.s32.totalorder %s77, 0
    %s80 = sadd.s32 %s79, 1
    %s81 = scalar_select %p78, %s79, %s80
    %p84 = pneg %p78
    %p85 = scmp.eq.s32.totalorder %s9, 2
    %p86 = por %p84, %p85
    %p87 = scmp.ne.s32.totalorder %s79, %s82
    %p88 = scmp.eq.s32.totalorder %s9, 0
    %p89 = por %p87, %p88
    %p90 = scmp.ne.s32.totalorder %s79, %s82
    %p91 = scmp.eq.s32.totalorder %s14, 2
    %p92 = por %p90, %p91
    %p93 = scmp.ne.s32.totalorder %s82, %s83
    %p94 = scmp.eq.s32.totalorder %s14, 0
    %p95 = por %p93, %p94
    %p96 = scmp.ne.s32.totalorder %s82, %s83
    %p97 = scmp.eq.s32.totalorder %s15, 2
    %p98 = por %p96, %p97
    %p100 = scmp.ne.s32.totalorder %s83, %s99
    %p101 = scmp.eq.s32.totalorder %s15, 0
    %p102 = por %p100, %p101
    %s103 = ssub.s32 %s16, %s42
    %s104 = ssub.s32 %s18, %s34
    %s105 = sor.u32 %s103, %s104
    %p106 = scmp.eq.s32.totalorder %s105, 0
    %s108 = sadd.s32 %s107, 1
    %s109 = scalar_select %p106, %s107, %s108
    %p112 = pneg %p106
    %p113 = scmp.eq.s32.totalorder %s9, 2
    %p114 = por %p112, %p113
    %p115 = scmp.ne.s32.totalorder %s107, %s110
    %p116 = scmp.eq.s32.totalorder %s9, 0
    %p117 = por %p115, %p116
    %p118 = scmp.ne.s32.totalorder %s107, %s110
    %p119 = scmp.eq.s32.totalorder %s14, 2
    %p120 = por %p118, %p119
    %p121 = scmp.ne.s32.totalorder %s110, %s111
    %p122 = scmp.eq.s32.totalorder %s14, 0
    %p123 = por %p121, %p122
    %p124 = scmp.ne.s32.totalorder %s110, %s111
    %p125 = scmp.eq.s32.totalorder %s15, 2
    %p126 = por %p124, %p125
    %p128 = scmp.ne.s32.totalorder %s111, %s127
    %p129 = scmp.eq.s32.totalorder %s15, 0
    %p130 = por %p128, %p129
    %s131 = ssub.s32 %s16, %s42
    %s132 = ssub.s32 %s17, %s38
    %s133 = sor.u32 %s131, %s132
    %s134 = ssub.s32 %s18, %s34
    %s135 = sor.u32 %s133, %s134
    %p136 = scmp.eq.s32.totalorder %s135, 0
    %s138 = sadd.s32 %s137, 1
    %s139 = scalar_select %p136, %s137, %s138
    %p142 = pneg %p136
    %p143 = scmp.eq.s32.totalorder %s9, 2
    %p144 = por %p142, %p143
    %p145 = scmp.ne.s32.totalorder %s137, %s140
    %p146 = scmp.eq.s32.totalorder %s9, 0
    %p147 = por %p145, %p146
    %p148 = scmp.ne.s32.totalorder %s137, %s140
    %p149 = scmp.eq.s32.totalorder %s14, 2
    %p150 = por %p148, %p149
    %p151 = scmp.ne.s32.totalorder %s140, %s141
    %p152 = scmp.eq.s32.totalorder %s14, 0
    %p153 = por %p151, %p152
    %p154 = scmp.ne.s32.totalorder %s140, %s141
    %p155 = scmp.eq.s32.totalorder %s15, 2
    %p156 = por %p154, %p155
    %p158 = scmp.ne.s32.totalorder %s141, %s157
    %p159 = scmp.eq.s32.totalorder %s15, 0
    %p160 = por %p158, %p159
    %p161 = scmp.le.s32.totalorder 1, %s9
    %p162 = scmp.lt.s32.totalorder %s9, 4
    %p163 = pnand %p161, %p162
    %p164 = pneg %p163
    // Predicated region
    $region9: #{self_attention_forward.3} parent=5 // pred_check
      _
    $region10: #{self_attention_forward.3} parent=5 // pred_check_branch
      %166 = sbr.rel (%p163) target = $region12
    $region11: #{self_attention_forward.3} parent=5 // pred_region
      %s167 = ssub.s32 %s9, 1
    $region12: #{self_attention_forward.3} parent=5 // pred_fallthru
      _
    %p168 = scmp.lt.s32.totalorder %s9, 3
    // Predicated region
    $region13: #{self_attention_forward.3} parent=5 // pred_check
      %p169 = pneg %p168
    $region14: #{self_attention_forward.3} parent=5 // pred_check_branch
      %171 = sbr.rel (%p169) target = $region16
    $region15: #{self_attention_forward.3} parent=5 // pred_region
      // Predicated region
      $region17: #{self_attention_forward.3} parent=15 // pred_check
        %p172 = pneg %p59
      $region18: #{self_attention_forward.3} parent=15 // pred_check_branch
        %174 = sbr.rel (%p172) target = $region20
      $region19: #{self_attention_forward.3} parent=15 // pred_region
        %s175 = smul.u32 2, %s17
        %p176 = scmp.lt.s32.totalorder %s16, 2
        %s177 = scalar_select %p176, %s16, 2
        %p178 = scmp.lt.s32.totalorder %s175, 1
        %s179 = scalar_select %p178, %s175, 1
        %p180 = scmp.lt.s32.totalorder %s19, 0
        %s181 = scalar_select %p180, %s19, 0
        %s182 = sadd.s32 %s181, %s179
        %s183 = smul.addr %s177, 2
        %s184 = sadd.s32 %s182, %s183
        %s185 = smul.addr %s184, 4
        %s186 = scalar_lea.vmem %s0, %s185
        %s187 = smul.u32 2, %s17
      $region20: #{self_attention_forward.3} parent=15 // pred_fallthru
        _
      // Predicated region
      $region21: #{self_attention_forward.3} parent=15 // pred_check
        %p188 = pneg %p89
      $region22: #{self_attention_forward.3} parent=15 // pred_check_branch
        %190 = sbr.rel (%p188) target = $region24
      $region23: #{self_attention_forward.3} parent=15 // pred_region
        %s191 = smul.u32 16, %s19
        %p192 = scmp.lt.s32.totalorder %s16, 2
        %s193 = scalar_select %p192, %s16, 2
        %p194 = scmp.lt.s32.totalorder %s191, 15
        %s195 = scalar_select %p194, %s191, 15
        %p196 = scmp.lt.s32.totalorder %s18, 0
        %s197 = scalar_select %p196, %s18, 0
        %s198 = sadd.s32 %s197, %s195
        %s199 = smul.addr %s193, 16
        %s200 = sadd.s32 %s198, %s199
        %s201 = smul.addr %s200, 4
        %s202 = scalar_lea.vmem %s1, %s201
        %s203 = smul.u32 16, %s19
      $region24: #{self_attention_forward.3} parent=15 // pred_fallthru
        _
      // Predicated region
      $region25: #{self_attention_forward.3} parent=15 // pred_check
        %p204 = pneg %p117
      $region26: #{self_attention_forward.3} parent=15 // pred_check_branch
        %206 = sbr.rel (%p204) target = $region28
      $region27: #{self_attention_forward.3} parent=15 // pred_region
        %p207 = scmp.lt.s32.totalorder %s16, 2
        %s208 = scalar_select %p207, %s16, 2
        %p209 = scmp.lt.s32.totalorder %s18, 0
        %s210 = scalar_select %p209, %s18, 0
        %s211 = sadd.s32 %s210, %s208
        %s212 = scalar_lea.vmem %s2, %s211
      $region28: #{self_attention_forward.3} parent=15 // pred_fallthru
        _
    $region16: #{self_attention_forward.3} parent=5 // pred_fallthru
      _
    %p213 = scmp.le.s32.totalorder 1, %s9
    %p214 = scmp.lt.s32.totalorder %s9, 4
    %p215 = pnand %p213, %p214
    %p216 = pneg %p215
    // Predicated region
    $region29: #{self_attention_forward.3} parent=5 // pred_check
      _
    $region30: #{self_attention_forward.3} parent=5 // pred_check_branch
      %218 = sbr.rel (%p215) target = $region32
    $region31: #{self_attention_forward.3} parent=5 // pred_region
      %s219 = ssub.s32 %s9, 1
      %s220 = smul.u32 2, %s21
      %p221 = scmp.lt.s32.totalorder %s20, 2
      %s222 = scalar_select %p221, %s20, 2
      %p223 = scmp.lt.s32.totalorder %s220, 1
      %s224 = scalar_select %p223, %s220, 1
      %p225 = scmp.lt.s32.totalorder %s23, 0
      %s226 = scalar_select %p225, %s23, 0
      %s227 = sadd.s32 %s226, %s224
      %s228 = smul.addr %s222, 2
      %s229 = sadd.s32 %s227, %s228
      %s230 = smul.addr %s229, 4
      %s231 = scalar_lea.vmem %s0, %s230
      %p232 = pneg %p65
      %p233 = pneg %p62
      %s234 = smul.u32 16, %s23
      %p235 = scmp.lt.s32.totalorder %s20, 2
      %s236 = scalar_select %p235, %s20, 2
      %p237 = scmp.lt.s32.totalorder %s234, 15
      %s238 = scalar_select %p237, %s234, 15
      %p239 = scmp.lt.s32.totalorder %s22, 0
      %s240 = scalar_select %p239, %s22, 0
      %s241 = sadd.s32 %s240, %s238
      %s242 = smul.addr %s236, 16
      %s243 = sadd.s32 %s241, %s242
      %s244 = smul.addr %s243, 4
      %s245 = scalar_lea.vmem %s1, %s244
      %p246 = pneg %p95
      %p247 = pneg %p92
      %p248 = scmp.lt.s32.totalorder %s20, 2
      %s249 = scalar_select %p248, %s20, 2
      %p250 = scmp.lt.s32.totalorder %s22, 0
      %s251 = scalar_select %p250, %s22, 0
      %s252 = sadd.s32 %s251, %s249
      %s253 = scalar_lea.vmem %s2, %s252
      %p254 = pneg %p123
      %p255 = pneg %p120
      %p256 = pneg %p153
      %p257 = pneg %p150
      %s258 = smul.u32 2, %s21
      %p259 = scmp.lt.s32.totalorder %s20, 2
      %s260 = scalar_select %p259, %s20, 2
      %p261 = scmp.lt.s32.totalorder %s258, 1
      %s262 = scalar_select %p261, %s258, 1
      %p263 = scmp.lt.s32.totalorder %s22, 0
      %s264 = scalar_select %p263, %s22, 0
      %s265 = sadd.s32 %s264, %s262
      %s266 = smul.addr %s260, 2
      %s267 = sadd.s32 %s265, %s266
      %s268 = smul.addr %s267, 4
      %s269 = scalar_lea.vmem %s3, %s268
      %s270 = smul.u32 2, %s21
      %p271 = scmp.lt.s32.totalorder %s20, 2
      %s272 = scalar_select %p271, %s20, 2
      %p273 = scmp.lt.s32.totalorder %s270, 1
      %s274 = scalar_select %p273, %s270, 1
      %p275 = scmp.lt.s32.totalorder %s23, 0
      %s276 = scalar_select %p275, %s23, 0
      %s277 = sadd.s32 %s276, %s274
      %s278 = smul.addr %s272, 2
      %s279 = sadd.s32 %s277, %s278
      %s280 = smul.addr %s279, 4
      %s281 = scalar_lea.vmem %s0, %s280
      %s282 = smul.u32 2, %s21
      %s283 = smul.u32 16, %s23
      %p284 = scmp.lt.s32.totalorder %s20, 2
      %s285 = scalar_select %p284, %s20, 2
      %p286 = scmp.lt.s32.totalorder %s283, 15
      %s287 = scalar_select %p286, %s283, 15
      %p288 = scmp.lt.s32.totalorder %s22, 0
      %s289 = scalar_select %p288, %s22, 0
      %s290 = sadd.s32 %s289, %s287
      %s291 = smul.addr %s285, 16
      %s292 = sadd.s32 %s290, %s291
      %s293 = smul.addr %s292, 4
      %s294 = scalar_lea.vmem %s1, %s293
      %s295 = smul.u32 16, %s23
      %p296 = scmp.lt.s32.totalorder %s20, 2
      %s297 = scalar_select %p296, %s20, 2
      %p298 = scmp.lt.s32.totalorder %s22, 0
      %s299 = scalar_select %p298, %s22, 0
      %s300 = sadd.s32 %s299, %s297
      %s301 = scalar_lea.vmem %s2, %s300
      %s302 = smul.u32 2, %s21
      %p303 = scmp.lt.s32.totalorder %s20, 2
      %s304 = scalar_select %p303, %s20, 2
      %p305 = scmp.lt.s32.totalorder %s302, 1
      %s306 = scalar_select %p305, %s302, 1
      %p307 = scmp.lt.s32.totalorder %s22, 0
      %s308 = scalar_select %p307, %s22, 0
      %s309 = sadd.s32 %s308, %s306
      %s310 = smul.addr %s304, 2
      %s311 = sadd.s32 %s309, %s310
      %s312 = smul.addr %s311, 4
      %s313 = scalar_lea.vmem %s3, %s312
      %s314 = smul.u32 2, %s21
      %p315 = scmp.eq.s32.totalorder %s23, 0
      // Predicated region
      $region33: #{self_attention_forward.3} parent=31 // pred_check
        %p316 = pneg %p315
      $region34: #{self_attention_forward.3} parent=31 // pred_check_branch
        %318 = sbr.rel (%p316) target = $region36
      $region35: #{self_attention_forward.3} parent=31 // pred_region
        %319 = vst [vmem:[#allocation2] sm:$0xff] 0.0
        %320 = vst [vmem:[#allocation2 + $0x8] sm:$0xff] 0.0
      $region36: #{self_attention_forward.3} parent=31 // pred_fallthru
        _
      %v321 = vld [vmem:[#allocation2] sm:$0xff]
      %v322 = vld [vmem:[#allocation2 + $0x8] sm:$0xff]
      %v323 = vld [vmem:[%s281] sm:$0xf]
      %v324 = vld [vmem:[%s281 + $0x4] sm:$0xf]
      %v325 = vld [vmem:[%s294] sm:$0xf]
      %v326 = vld [vmem:[%s294 + $0x4] sm:$0xf]
      %v327 = vld [vmem:[%s294 + $0x8] sm:$0xf]
      %v328 = vld [vmem:[%s294 + $0xc] sm:$0xf]
      %v329 = vld [vmem:[%s294 + $0x10] sm:$0xf]
      %v330 = vld [vmem:[%s294 + $0x14] sm:$0xf]
      %v331 = vld [vmem:[%s294 + $0x18] sm:$0xf]
      %v332 = vld [vmem:[%s294 + $0x1c] sm:$0xf]
      %v333 = vld [vmem:[%s294 + $0x20] sm:$0xf]
      %v334 = vld [vmem:[%s294 + $0x24] sm:$0xf]
      %v335 = vld [vmem:[%s294 + $0x28] sm:$0xf]
      %v336 = vld [vmem:[%s294 + $0x2c] sm:$0xf]
      %v337 = vld [vmem:[%s294 + $0x30] sm:$0xf]
      %v338 = vld [vmem:[%s294 + $0x34] sm:$0xf]
      %v339 = vld [vmem:[%s294 + $0x38] sm:$0xf]
      %v340 = vld [vmem:[%s294 + $0x3c] sm:$0xf]
      %v343 = vunpack.c.l.b16 %v323
      %v344 = vunpack.c.l.b16 %v324
      %v345 = vpack.c.b16 %v344, %v343
      %v363 = vunpack.c.l.b16 %v325
      %v364 = vunpack.c.l.b16 %v326
      %v365 = vunpack.c.l.b16 %v327
      %v366 = vunpack.c.l.b16 %v328
      %v367 = vunpack.c.l.b16 %v329
      %v368 = vunpack.c.l.b16 %v330
      %v369 = vunpack.c.l.b16 %v331
      %v370 = vunpack.c.l.b16 %v332
      %v371 = vunpack.c.l.b16 %v333
      %v372 = vunpack.c.l.b16 %v334
      %v373 = vunpack.c.l.b16 %v335
      %v374 = vunpack.c.l.b16 %v336
      %v375 = vunpack.c.l.b16 %v337
      %v376 = vunpack.c.l.b16 %v338
      %v377 = vunpack.c.l.b16 %v339
      %v378 = vunpack.c.l.b16 %v340
      %v379 = vpack.c.b16 %v364, %v363
      %v380 = vpack.c.b16 %v366, %v365
      %v381 = vpack.c.b16 %v368, %v367
      %v382 = vpack.c.b16 %v370, %v369
      %v383 = vpack.c.b16 %v372, %v371
      %v384 = vpack.c.b16 %v374, %v373
      %v385 = vpack.c.b16 %v376, %v375
      %v386 = vpack.c.b16 %v378, %v377
      %395 = vmatpush.bf16.msra.mxu0 %v386
      %396 = vmatpush.bf16.msra.mxu0 %v385
      %397 = vmatpush.bf16.msra.mxu0 %v384
      %398 = vmatpush.bf16.msra.mxu0 %v383
      %399 = vmatpush.bf16.msra.mxu0 %v382
      %400 = vmatpush.bf16.msra.mxu0 %v381
      %401 = vmatpush.bf16.msra.mxu0 %v380
      %402 = vmatpush.bf16.msra.mxu0 %v379
      %403 = vmatmul.bf16.gmra.mxu0 %v345
      %v404 = vpop.f32.mrf.mxu0
      %v405 = vadd.f32 0.0, %v404
      %v406 = vpop.f32.mrf.mxu0
      %v407 = vadd.f32 0.0, %v406
      %408 = vdwg.mxu0
      %v409 = vadd.f32 %v321, %v405
      %v410 = vadd.f32 %v322, %v407
      %411 = vst [vmem:[#allocation2] sm:$0xff] %v409
      %412 = vst [vmem:[#allocation2 + $0x8] sm:$0xff] %v410
      // Predicated region
      $region37: #{self_attention_forward.3} parent=31 // pred_check
        %p413 = pneg %p315
      $region38: #{self_attention_forward.3} parent=31 // pred_check_branch
        %415 = sbr.rel (%p413) target = $region40
      $region39: #{self_attention_forward.3} parent=31 // pred_region
        %v416 = vld [vmem:[#allocation2] sm:$0xff]
        %v417 = vld [vmem:[#allocation2 + $0x8] sm:$0xff]
        %v418 = vld [vmem:[%s301] sm:$0x1]
        %v420 = vperm.slane %v418, 0
        %v422 = vadd.f32 %v416, %v420
        %v423 = vadd.f32 %v417, %v420
        %v424 = vpack.c.bf16 %v422, %v422
        %v425 = vpack.c.bf16 %v423, %v423
        %426 = vst [vmem:[%s313] sm:$0xf] %v424
        %427 = vst [vmem:[%s313 + $0x4] sm:$0xf] %v425
      $region40: #{self_attention_forward.3} parent=31 // pred_fallthru
        _
      %s428 = smul.u32 2, %s21
      %p429 = scmp.lt.s32.totalorder %s20, 2
      %s430 = scalar_select %p429, %s20, 2
      %p431 = scmp.lt.s32.totalorder %s428, 1
      %s432 = scalar_select %p431, %s428, 1
      %p433 = scmp.lt.s32.totalorder %s22, 0
      %s434 = scalar_select %p433, %s22, 0
      %s435 = sadd.s32 %s434, %s432
      %s436 = smul.addr %s430, 2
      %s437 = sadd.s32 %s435, %s436
      %s438 = smul.addr %s437, 4
      %s439 = scalar_lea.vmem %s3, %s438
      // Predicated region
      $region41: #{self_attention_forward.3} parent=31 // pred_check
        %p440 = pneg %p150
      $region42: #{self_attention_forward.3} parent=31 // pred_check_branch
        %442 = sbr.rel (%p440) target = $region44
      $region43: #{self_attention_forward.3} parent=31 // pred_region
        %s443 = smul.u32 2, %s21
      $region44: #{self_attention_forward.3} parent=31 // pred_fallthru
        _
    $region32: #{self_attention_forward.3} parent=5 // pred_fallthru
      _
    %p444 = scmp.le.s32.totalorder 2, %s9
    // Predicated region
    $region45: #{self_attention_forward.3} parent=5 // pred_check
      %p445 = pneg %p444
    $region46: #{self_attention_forward.3} parent=5 // pred_check_branch
      %447 = sbr.rel (%p445) target = $region48
    $region47: #{self_attention_forward.3} parent=5 // pred_region
      %s448 = ssub.s32 %s9, 2
      // Predicated region
      $region49: #{self_attention_forward.3} parent=47 // pred_check
        %p449 = pneg %p156
      $region50: #{self_attention_forward.3} parent=47 // pred_check_branch
        %451 = sbr.rel (%p449) target = $region52
      $region51: #{self_attention_forward.3} parent=47 // pred_region
        %s452 = smul.u32 2, %s25
        %p453 = scmp.lt.s32.totalorder %s24, 2
        %s454 = scalar_select %p453, %s24, 2
        %p455 = scmp.lt.s32.totalorder %s452, 1
        %s456 = scalar_select %p455, %s452, 1
        %p457 = scmp.lt.s32.totalorder %s26, 0
        %s458 = scalar_select %p457, %s26, 0
        %s459 = sadd.s32 %s458, %s456
        %s460 = smul.addr %s454, 2
        %s461 = sadd.s32 %s459, %s460
        %s462 = smul.addr %s461, 4
        %s463 = scalar_lea.vmem %s3, %s462
      $region52: #{self_attention_forward.3} parent=47 // pred_fallthru
        _
    $region48: #{self_attention_forward.3} parent=5 // pred_fallthru
      _
  $region6: #{self_attention_forward.3} parent=0 // loop_footer
    %s13 = sadd.s32 1, %s9
  $region7: #{self_attention_forward.3} parent=0 // loop_footer_branch
    %8 = sbr.rel target = $region3
  $region8: #{self_attention_forward.3} parent=0 // loop_exit
    _

// kernel: self_attention_forward.5
$region0: #{self_attention_forward.5}
  #allocation0 [shape = 'u32[]', space=smem, size = 0x4, offset = 0x4, fixed_abs, tag = 'smem constant byte address 0x4 - core index']
  #allocation1 [shape = 'u32[72,128]{1,0:T(1,128)}', space=vmem, size = 0x9000, scoped, tag = 'internal scratch']
  #allocation2 [shape = 'f32[16,128]{1,0:T(8,128)}', space=vmem, size = 0x2000, scoped, tag = 'scratch operand']
  %s0 = inlined_call_operand.vmem [shape: bf16[16,128], index: 0, kind: input, shape index: {}]
  %s1 = inlined_call_operand.vmem [shape: bf16[128,128], index: 1, kind: input, shape index: {}]
  %s2 = inlined_call_operand.vmem [shape: f32[1,128], index: 2, kind: input, shape index: {}]
  %s3 = inlined_call_operand.vmem [shape: f32[16,128], index: 3, kind: output, shape index: {}]
  %s4 = sld [smem:[#allocation0]]
  $region30: #{self_attention_forward.5} parent=0
    _
  %s6 = ssub.s32 1, %s4
  %s7 = scalar_select 0, %s6, %s4
  // Predicated region
  $region2: #{self_attention_forward.5} parent=0 // pred_check
    _
  $region3: #{self_attention_forward.5} parent=0 // pred_check_branch
    %9 = sbr.rel (0) target = $region5
  $region4: #{self_attention_forward.5} parent=0 // pred_region
    _
  $region5: #{self_attention_forward.5} parent=0 // pred_fallthru
    _
  // Predicated region
  $region6: #{self_attention_forward.5} parent=0 // pred_check
    _
  $region7: #{self_attention_forward.5} parent=0 // pred_check_branch
    %11 = sbr.rel (0) target = $region9
  $region8: #{self_attention_forward.5} parent=0 // pred_region
    _
  $region9: #{self_attention_forward.5} parent=0 // pred_fallthru
    _
  // Predicated region
  $region10: #{self_attention_forward.5} parent=0 // pred_check
    _
  $region11: #{self_attention_forward.5} parent=0 // pred_check_branch
    %13 = sbr.rel (0) target = $region13
  $region12: #{self_attention_forward.5} parent=0 // pred_region
    _
  $region13: #{self_attention_forward.5} parent=0 // pred_fallthru
    _
  %p14 = scmp.eq.s32.totalorder 0, 0
  // Predicated region
  $region14: #{self_attention_forward.5} parent=0 // pred_check
    %p15 = pneg %p14
  $region15: #{self_attention_forward.5} parent=0 // pred_check_branch
    %17 = sbr.rel (%p15) target = $region17
  $region16: #{self_attention_forward.5} parent=0 // pred_region
    %18 = vst [vmem:[#allocation2] sm:$0xff] 0.0
    %19 = vst [vmem:[#allocation2 + $0x8] sm:$0xff] 0.0
  $region17: #{self_attention_forward.5} parent=0 // pred_fallthru
    _
  %v20 = vld [vmem:[#allocation2] sm:$0xff]
  %v21 = vld [vmem:[#allocation2 + $0x8] sm:$0xff]
  %v22 = vld [vmem:[%s0] sm:$0xf]
  %v23 = vld [vmem:[%s0 + $0x4] sm:$0xf]
  %v24 = vld [vmem:[%s1] sm:$0xf]
  %v25 = vld [vmem:[%s1 + $0x4] sm:$0xf]
  %v26 = vld [vmem:[%s1 + $0x8] sm:$0xf]
  %v27 = vld [vmem:[%s1 + $0xc] sm:$0xf]
  %v28 = vld [vmem:[%s1 + $0x10] sm:$0xf]
  %v29 = vld [vmem:[%s1 + $0x14] sm:$0xf]
  %v30 = vld [vmem:[%s1 + $0x18] sm:$0xf]
  %v31 = vld [vmem:[%s1 + $0x1c] sm:$0xf]
  %v32 = vld [vmem:[%s1 + $0x20] sm:$0xf]
  %v33 = vld [vmem:[%s1 + $0x24] sm:$0xf]
  %v34 = vld [vmem:[%s1 + $0x28] sm:$0xf]
  %v35 = vld [vmem:[%s1 + $0x2c] sm:$0xf]
  %v36 = vld [vmem:[%s1 + $0x30] sm:$0xf]
  %v37 = vld [vmem:[%s1 + $0x34] sm:$0xf]
  %v38 = vld [vmem:[%s1 + $0x38] sm:$0xf]
  %v39 = vld [vmem:[%s1 + $0x3c] sm:$0xf]
  %v42 = vunpack.c.l.b16 %v22
  %v43 = vunpack.c.l.b16 %v23
  %v44 = vpack.c.b16 %v43, %v42
  %v62 = vunpack.c.l.b16 %v24
  %v63 = vunpack.c.l.b16 %v25
  %v64 = vunpack.c.l.b16 %v26
  %v65 = vunpack.c.l.b16 %v27
  %v66 = vunpack.c.l.b16 %v28
  %v67 = vunpack.c.l.b16 %v29
  %v68 = vunpack.c.l.b16 %v30
  %v69 = vunpack.c.l.b16 %v31
  %v70 = vunpack.c.l.b16 %v32
  %v71 = vunpack.c.l.b16 %v33
  %v72 = vunpack.c.l.b16 %v34
  %v73 = vunpack.c.l.b16 %v35
  %v74 = vunpack.c.l.b16 %v36
  %v75 = vunpack.c.l.b16 %v37
  %v76 = vunpack.c.l.b16 %v38
  %v77 = vunpack.c.l.b16 %v39
  %v78 = vpack.c.b16 %v63, %v62
  %v79 = vpack.c.b16 %v65, %v64
  %v80 = vpack.c.b16 %v67, %v66
  %v81 = vpack.c.b16 %v69, %v68
  %v82 = vpack.c.b16 %v71, %v70
  %v83 = vpack.c.b16 %v73, %v72
  %v84 = vpack.c.b16 %v75, %v74
  %v85 = vpack.c.b16 %v77, %v76
  %94 = vmatpush.bf16.msra.mxu0 %v85
  %95 = vmatpush.bf16.msra.mxu0 %v84
  %96 = vmatpush.bf16.msra.mxu0 %v83
  %97 = vmatpush.bf16.msra.mxu0 %v82
  %98 = vmatpush.bf16.msra.mxu0 %v81
  %99 = vmatpush.bf16.msra.mxu0 %v80
  %100 = vmatpush.bf16.msra.mxu0 %v79
  %101 = vmatpush.bf16.msra.mxu0 %v78
  %102 = vmatmul.bf16.gmra.mxu0 %v44
  %v103 = vpop.f32.mrf.mxu0
  %v104 = vadd.f32 0.0, %v103
  %v105 = vpop.f32.mrf.mxu0
  %v106 = vadd.f32 0.0, %v105
  %107 = vdwg.mxu0
  %v108 = vadd.f32 %v20, %v104
  %v109 = vadd.f32 %v21, %v106
  %110 = vst [vmem:[#allocation2] sm:$0xff] %v108
  %111 = vst [vmem:[#allocation2 + $0x8] sm:$0xff] %v109
  // Predicated region
  $region18: #{self_attention_forward.5} parent=0 // pred_check
    %p112 = pneg %p14
  $region19: #{self_attention_forward.5} parent=0 // pred_check_branch
    %114 = sbr.rel (%p112) target = $region21
  $region20: #{self_attention_forward.5} parent=0 // pred_region
    %v115 = vld [vmem:[#allocation2] sm:$0xff]
    %v116 = vld [vmem:[#allocation2 + $0x8] sm:$0xff]
    %v117 = vld [vmem:[%s2] sm:$0x1]
    %v119 = vperm.slane %v117, 0
    %v121 = vadd.f32 %v115, %v119
    %v122 = vadd.f32 %v116, %v119
    %123 = vst [vmem:[%s3] sm:$0xff] %v121
    %124 = vst [vmem:[%s3 + $0x8] sm:$0xff] %v122
  $region21: #{self_attention_forward.5} parent=0 // pred_fallthru
    _
  // Predicated region
  $region22: #{self_attention_forward.5} parent=0 // pred_check
    _
  $region23: #{self_attention_forward.5} parent=0 // pred_check_branch
    %126 = sbr.rel (0) target = $region25
  $region24: #{self_attention_forward.5} parent=0 // pred_region
    _
  $region25: #{self_attention_forward.5} parent=0 // pred_fallthru
    _
  // Predicated region
  $region26: #{self_attention_forward.5} parent=0 // pred_check
    _
  $region27: #{self_attention_forward.5} parent=0 // pred_check_branch
    %128 = sbr.rel (0) target = $region29
  $region28: #{self_attention_forward.5} parent=0 // pred_region
    _
  $region29: #{self_attention_forward.5} parent=0 // pred_fallthru
    _

</llo_original>
